<compile_context>
chip_gen: v6e
topology: v6e:2x2x1
jax: 0.10.0
libtpu: 0.0.40
codegen_flags: <defaults>
</compile_context>

<pallas_src>
import jax
import jax.numpy as jnp
from jax import lax
from jax.experimental import pallas as pl
from jax.experimental.pallas import tpu as pltpu

HID = 4  # hidden channels of the synthetic "Unet" projector


# --------------------------------------------------------------------------
# Fused kernel (one grid step = one image):
#   conv3x3 (1 -> HID) + bias + ReLU
#   conv3x3 (HID -> 1) + bias                       -> tomo
#   clean = exp(proj_scalar) * tomo
#   proj  = exp(scalar) * (clean + sigma[n] * noise)
#
# SMEM inputs : sigma (N,), w1 (HID*9,), b1 (HID,), w2 (HID*9,), b2 (1,),
#               exps (2,) = [exp(proj_scalar), exp(scalar)]
# VMEM inputs : x (1,H,W), noise (1,H,W)
# VMEM outputs: tomo, clean, proj (1,H,W) each
# VMEM scratch: xpad (H+2,W+2), hpad (HID,H+2,W+2)  -- in-kernel zero halo
# --------------------------------------------------------------------------
def _fused_kernel(sigma_ref, w1_ref, b1_ref, w2_ref, b2_ref, exps_ref,
                  x_ref, noise_ref,
                  tomo_ref, clean_ref, proj_ref,
                  xpad_ref, hpad_ref):
    n = pl.program_id(0)
    H = tomo_ref.shape[1]
    W = tomo_ref.shape[2]

    # ---- in-kernel zero halo (replaces jnp.pad HBM copies) -----------------
    # Re-zero every grid step: scratch is per-core, and under ("parallel",)
    # megacore sharding a given core may never execute n == 0, so a
    # pl.when(n == 0) init would leave garbage halo on the other core.
    xpad_ref[...] = jnp.zeros_like(xpad_ref)
    hpad_ref[...] = jnp.zeros_like(hpad_ref)
    xpad_ref[1:H + 1, 1:W + 1] = x_ref[0]

    # ---- conv1: 1 -> HID, 3x3, bias + fused ReLU ---------------------------
    # Load each shifted slab once; reuse it across all HID output channels.
    x_taps = [xpad_ref[dh:dh + H, dw:dw + W]
              for dh in range(3) for dw in range(3)]
    for c in range(HID):
        acc = jnp.full((H, W), b1_ref[c], jnp.float32)
        for t in range(9):
            acc = acc + w1_ref[c * 9 + t] * x_taps[t]
        hpad_ref[c, 1:H + 1, 1:W + 1] = jnp.maximum(acc, 0.0)

    # ---- conv2: HID -> 1, 3x3, bias ----------------------------------------
    tomo = jnp.full((H, W), b2_ref[0], jnp.float32)
    for c in range(HID):
        for dh in range(3):
            for dw in range(3):
                tomo = tomo + (w2_ref[c * 9 + dh * 3 + dw]
                               * hpad_ref[c, dh:dh + H, dw:dw + W])

    # ---- epilogue: scaling + noise (fused, no extra HBM round-trip) --------
    clean = exps_ref[0] * tomo
    proj = exps_ref[1] * (clean + sigma_ref[n] * noise_ref[0])

    tomo_ref[0] = tomo
    clean_ref[0] = clean
    proj_ref[0] = proj


# --------------------------------------------------------------------------
# Wrapper
# --------------------------------------------------------------------------
def denoise_simulator_forward(params, rotmat, ctf_params, shift_params, noise_params):
    x = noise_params['real_proj']                 # (N, 1, H, W) float32
    N, _, H, W = x.shape
    dtype = jnp.float32

    x3 = x[:, 0].astype(dtype)                    # (N, H, W) -- lane-dense in W
    noise3 = noise_params['noise'][:, 0].astype(dtype)
    sigma = noise_params['noise_sigma'].astype(dtype)
    # exp() of the two learned 0-d scalars is parameter glue (scalar exp).
    exps = jnp.exp(jnp.stack([params['proj_scalar'][0],
                              params['scalar'][0]])).astype(dtype)

    smem_spec = pl.BlockSpec(memory_space=pltpu.MemorySpace.SMEM)
    img_spec = pl.BlockSpec((1, H, W), lambda n: (n, 0, 0))

    # VMEM budget: (1 + HID) padded scratch planes + double-buffered streams
    # (2 inputs + 3 outputs).  Clamp into a range safe on v5e/v6e/v7x.
    padded_bytes = (H + 2) * (W + 2) * 4
    plane_bytes = H * W * 4
    need = (1 + HID) * padded_bytes + 2 * 5 * plane_bytes
    vmem_limit = int(min(max(2 * need, 16 << 20), 64 << 20))

    # ---- ctf / shift branch disabled (config.ctf = config.shift = False) ---
    # TODO(synk): CTF/Shift/FFT branch of the PyTorch module not implemented.

    tomo, clean, proj = pl.pallas_call(
        _fused_kernel,
        out_shape=(
            jax.ShapeDtypeStruct((N, H, W), dtype),
            jax.ShapeDtypeStruct((N, H, W), dtype),
            jax.ShapeDtypeStruct((N, H, W), dtype),
        ),
        grid=(N,),
        in_specs=[
            smem_spec,   # sigma
            smem_spec,   # w1
            smem_spec,   # b1
            smem_spec,   # w2
            smem_spec,   # b2
            smem_spec,   # exps
            img_spec,    # x
            img_spec,    # noise
        ],
        out_specs=(img_spec, img_spec, img_spec),
        scratch_shapes=[
            pltpu.VMEM((H + 2, W + 2), dtype),        # zero-padded input halo
            pltpu.VMEM((HID, H + 2, W + 2), dtype),   # hidden activation + halo
        ],
        compiler_params=pltpu.CompilerParams(
            dimension_semantics=("parallel",),        # images independent -> megacore
            vmem_limit_bytes=vmem_limit,
        ),
    )(sigma, params['w1'].reshape(-1), params['b1'],
      params['w2'].reshape(-1), params['b2'], exps,
      x3, noise3)

    return {
        'rotmat': rotmat,
        'ctf_params': ctf_params,
        'shift_params': shift_params,
        'noise_params': noise_params,
        'tomo': tomo[:, None],    # (N, 1, H, W)
        'clean': clean[:, None],  # (N, 1, H, W)
        'proj': proj[:, None],    # (N, 1, H, W)
    }


# --------------------------------------------------------------------------
# Pure-JAX reference (for correctness check)
# --------------------------------------------------------------------------
def reference_forward(params, x, noise, sigma):
    dn = ('NCHW', 'OIHW', 'NCHW')
    h = lax.conv_general_dilated(x, params['w1'][:, None], (1, 1), 'SAME',
                                 dimension_numbers=dn)
    h = jnp.maximum(h + params['b1'][None, :, None, None], 0.0)
    tomo = lax.conv_general_dilated(h, params['w2'][None], (1, 1), 'SAME',
                                    dimension_numbers=dn)
    tomo = tomo + params['b2'][None, :, None, None]
    clean = jnp.exp(params['proj_scalar'][0]) * tomo
    proj = jnp.exp(params['scalar'][0]) * (clean + sigma[:, None, None, None] * noise)
    return tomo, clean, proj


# --------------------------------------------------------------------------
def init_params(key):
    k1, k2 = jax.random.split(key)
    return {
        'w1': (jax.random.normal(k1, (HID, 3, 3), jnp.float32) * 0.1),
        'b1': jnp.full((HID,), 0.01, jnp.float32),
        'w2': (jax.random.normal(k2, (HID, 3, 3), jnp.float32) * 0.1),
        'b2': jnp.full((1,), 0.02, jnp.float32),
        'proj_scalar': jnp.zeros((1,), jnp.float32),   # torch.nn.Parameter([0])
        'scalar': jnp.zeros((1,), jnp.float32),        # torch.nn.Parameter([0])
    }


if __name__ == "__main__":
    key = jax.random.PRNGKey(0)
    kx, kn, ks, kr, kp = jax.random.split(key, 5)

    N, H = 2, 16  # small side_len = 16, chunk of 2 projections
    real_proj = jax.random.normal(kx, (N, 1, H, H), jnp.float32)
    noise = jax.random.normal(kn, (N, 1, H, H), jnp.float32)
    noise_sigma = jnp.abs(jax.random.normal(ks, (N,), jnp.float32)) * 0.1 + 0.05
    rotmat = jax.random.normal(kr, (N, 3, 3), jnp.float32)

    params = init_params(kp)
    noise_params = {'real_proj': real_proj, 'noise': noise, 'noise_sigma': noise_sigma}

    out = denoise_simulator_forward(params, rotmat, None, None, noise_params)
    jax.block_until_ready(out['proj'])

    # correctness vs pure-JAX reference
    tomo_ref, clean_ref, proj_ref = reference_forward(params, real_proj, noise, noise_sigma)
    assert jnp.allclose(out['tomo'], tomo_ref, atol=1e-4, rtol=1e-4)
    assert jnp.allclose(out['clean'], clean_ref, atol=1e-4, rtol=1e-4)
    assert jnp.allclose(out['proj'], proj_ref, atol=1e-4, rtol=1e-4)

    print("KERNEL_OK")
</pallas_src>

<mosaic_0001>
module attributes {stable_mosaic.version = 11 : i64} {
  func.func @_fused_kernel(%arg0: i32, %arg1: memref<2xf32, #tpu.memory_space<smem>>, %arg2: memref<36xf32, #tpu.memory_space<smem>>, %arg3: memref<4xf32, #tpu.memory_space<smem>>, %arg4: memref<36xf32, #tpu.memory_space<smem>>, %arg5: memref<1xf32, #tpu.memory_space<smem>>, %arg6: memref<2xf32, #tpu.memory_space<smem>>, %arg7: memref<1x16x16xf32, #tpu.memory_space<vmem>>, %arg8: memref<1x16x16xf32, #tpu.memory_space<vmem>>, %arg9: memref<1x16x16xf32, #tpu.memory_space<vmem>>, %arg10: memref<1x16x16xf32, #tpu.memory_space<vmem>>, %arg11: memref<1x16x16xf32, #tpu.memory_space<vmem>>, %arg12: memref<18x18xf32, #tpu.memory_space<vmem>>, %arg13: memref<4x18x18xf32, #tpu.memory_space<vmem>>) attributes {dimension_semantics = [#tpu.dimension_semantics<parallel>], iteration_bounds = array<i64: 2>, scalar_prefetch = 0 : i64, scratch_operands = 2 : i64, tpu.core_type = #tpu.core_type<tc>, window_params = [{transform_indices = @transform_0, window_bounds = array<i64: 2>}, {transform_indices = @transform_1, window_bounds = array<i64: 36>}, {transform_indices = @transform_2, window_bounds = array<i64: 4>}, {transform_indices = @transform_3, window_bounds = array<i64: 36>}, {transform_indices = @transform_4, window_bounds = array<i64: 1>}, {transform_indices = @transform_5, window_bounds = array<i64: 2>}, {transform_indices = @transform_6, window_bounds = array<i64: 1, 16, 16>}, {transform_indices = @transform_7, window_bounds = array<i64: 1, 16, 16>}, {transform_indices = @transform_8, window_bounds = array<i64: 1, 16, 16>}, {transform_indices = @transform_9, window_bounds = array<i64: 1, 16, 16>}, {transform_indices = @transform_10, window_bounds = array<i64: 1, 16, 16>}]} {
    %cst = arith.constant 0.000000e+00 : f32
    %0 = vector.broadcast %cst : f32 to vector<18x18xf32>
    %c0 = arith.constant 0 : index
    %c0_0 = arith.constant 0 : index
    %1 = vector.load %arg12[%c0, %c0_0] : memref<18x18xf32, #tpu.memory_space<vmem>>, vector<18x18xf32>
    tpu.vector_store %arg12[%c0, %c0_0], %0 {strides = array<i32>} : memref<18x18xf32, #tpu.memory_space<vmem>>, vector<18x18xf32>,
    %cst_1 = arith.constant 0.000000e+00 : f32
    %2 = vector.broadcast %cst_1 : f32 to vector<4x18x18xf32>
    %c0_2 = arith.constant 0 : index
    %c0_3 = arith.constant 0 : index
    %c0_4 = arith.constant 0 : index
    %3 = vector.load %arg13[%c0_2, %c0_3, %c0_4] : memref<4x18x18xf32, #tpu.memory_space<vmem>>, vector<4x18x18xf32>
    tpu.vector_store %arg13[%c0_2, %c0_3, %c0_4], %2 {strides = array<i32>} : memref<4x18x18xf32, #tpu.memory_space<vmem>>, vector<4x18x18xf32>,
    %c0_5 = arith.constant 0 : index
    %c0_6 = arith.constant 0 : index
    %c0_7 = arith.constant 0 : index
    %4 = vector.load %arg7[%c0_5, %c0_6, %c0_7] : memref<1x16x16xf32, #tpu.memory_space<vmem>>, vector<1x16x16xf32>
    %5 = vector.shape_cast %4 : vector<1x16x16xf32> to vector<16x16xf32>
    %c1 = arith.constant 1 : index
    %c1_8 = arith.constant 1 : index
    %6 = vector.load %arg12[%c1, %c1_8] : memref<18x18xf32, #tpu.memory_space<vmem>>, vector<16x16xf32>
    tpu.vector_store %arg12[%c1, %c1_8], %5 {strides = array<i32>} : memref<18x18xf32, #tpu.memory_space<vmem>>, vector<16x16xf32>,
    %c0_9 = arith.constant 0 : index
    %c0_10 = arith.constant 0 : index
    %7 = vector.load %arg12[%c0_9, %c0_10] : memref<18x18xf32, #tpu.memory_space<vmem>>, vector<16x16xf32>
    %c0_11 = arith.constant 0 : index
    %c1_12 = arith.constant 1 : index
    %8 = vector.load %arg12[%c0_11, %c1_12] : memref<18x18xf32, #tpu.memory_space<vmem>>, vector<16x16xf32>
    %c0_13 = arith.constant 0 : index
    %c2 = arith.constant 2 : index
    %9 = vector.load %arg12[%c0_13, %c2] : memref<18x18xf32, #tpu.memory_space<vmem>>, vector<16x16xf32>
    %c1_14 = arith.constant 1 : index
    %c0_15 = arith.constant 0 : index
    %10 = vector.load %arg12[%c1_14, %c0_15] : memref<18x18xf32, #tpu.memory_space<vmem>>, vector<16x16xf32>
    %c1_16 = arith.constant 1 : index
    %c1_17 = arith.constant 1 : index
    %11 = vector.load %arg12[%c1_16, %c1_17] : memref<18x18xf32, #tpu.memory_space<vmem>>, vector<16x16xf32>
    %c1_18 = arith.constant 1 : index
    %c2_19 = arith.constant 2 : index
    %12 = vector.load %arg12[%c1_18, %c2_19] : memref<18x18xf32, #tpu.memory_space<vmem>>, vector<16x16xf32>
    %c2_20 = arith.constant 2 : index
    %c0_21 = arith.constant 0 : index
    %13 = vector.load %arg12[%c2_20, %c0_21] : memref<18x18xf32, #tpu.memory_space<vmem>>, vector<16x16xf32>
    %c2_22 = arith.constant 2 : index
    %c1_23 = arith.constant 1 : index
    %14 = vector.load %arg12[%c2_22, %c1_23] : memref<18x18xf32, #tpu.memory_space<vmem>>, vector<16x16xf32>
    %c2_24 = arith.constant 2 : index
    %c2_25 = arith.constant 2 : index
    %15 = vector.load %arg12[%c2_24, %c2_25] : memref<18x18xf32, #tpu.memory_space<vmem>>, vector<16x16xf32>
    %c0_26 = arith.constant 0 : index
    %16 = memref.load %arg3[%c0_26] : memref<4xf32, #tpu.memory_space<smem>>
    %17 = vector.broadcast %16 : f32 to vector<16x16xf32>
    %c0_27 = arith.constant 0 : index
    %18 = memref.load %arg2[%c0_27] : memref<36xf32, #tpu.memory_space<smem>>
    %19 = vector.broadcast %18 : f32 to vector<16x16xf32>
    %20 = arith.mulf %19, %7 : vector<16x16xf32>
    %21 = arith.addf %17, %20 : vector<16x16xf32>
    %c1_28 = arith.constant 1 : index
    %22 = memref.load %arg2[%c1_28] : memref<36xf32, #tpu.memory_space<smem>>
    %23 = vector.broadcast %22 : f32 to vector<16x16xf32>
    %24 = arith.mulf %23, %8 : vector<16x16xf32>
    %25 = arith.addf %21, %24 : vector<16x16xf32>
    %c2_29 = arith.constant 2 : index
    %26 = memref.load %arg2[%c2_29] : memref<36xf32, #tpu.memory_space<smem>>
    %27 = vector.broadcast %26 : f32 to vector<16x16xf32>
    %28 = arith.mulf %27, %9 : vector<16x16xf32>
    %29 = arith.addf %25, %28 : vector<16x16xf32>
    %c3 = arith.constant 3 : index
    %30 = memref.load %arg2[%c3] : memref<36xf32, #tpu.memory_space<smem>>
    %31 = vector.broadcast %30 : f32 to vector<16x16xf32>
    %32 = arith.mulf %31, %10 : vector<16x16xf32>
    %33 = arith.addf %29, %32 : vector<16x16xf32>
    %c4 = arith.constant 4 : index
    %34 = memref.load %arg2[%c4] : memref<36xf32, #tpu.memory_space<smem>>
    %35 = vector.broadcast %34 : f32 to vector<16x16xf32>
    %36 = arith.mulf %35, %11 : vector<16x16xf32>
    %37 = arith.addf %33, %36 : vector<16x16xf32>
    %c5 = arith.constant 5 : index
    %38 = memref.load %arg2[%c5] : memref<36xf32, #tpu.memory_space<smem>>
    %39 = vector.broadcast %38 : f32 to vector<16x16xf32>
    %40 = arith.mulf %39, %12 : vector<16x16xf32>
    %41 = arith.addf %37, %40 : vector<16x16xf32>
    %c6 = arith.constant 6 : index
    %42 = memref.load %arg2[%c6] : memref<36xf32, #tpu.memory_space<smem>>
    %43 = vector.broadcast %42 : f32 to vector<16x16xf32>
    %44 = arith.mulf %43, %13 : vector<16x16xf32>
    %45 = arith.addf %41, %44 : vector<16x16xf32>
    %c7 = arith.constant 7 : index
    %46 = memref.load %arg2[%c7] : memref<36xf32, #tpu.memory_space<smem>>
    %47 = vector.broadcast %46 : f32 to vector<16x16xf32>
    %48 = arith.mulf %47, %14 : vector<16x16xf32>
    %49 = arith.addf %45, %48 : vector<16x16xf32>
    %c8 = arith.constant 8 : index
    %50 = memref.load %arg2[%c8] : memref<36xf32, #tpu.memory_space<smem>>
    %51 = vector.broadcast %50 : f32 to vector<16x16xf32>
    %52 = arith.mulf %51, %15 : vector<16x16xf32>
    %53 = arith.addf %49, %52 : vector<16x16xf32>
    %cst_30 = arith.constant 0.000000e+00 : f32
    %54 = vector.broadcast %cst_30 : f32 to vector<16x16xf32>
    %55 = arith.maximumf %53, %54 : vector<16x16xf32>
    %c0_31 = arith.constant 0 : index
    %c1_32 = arith.constant 1 : index
    %c1_33 = arith.constant 1 : index
    %56 = vector.load %arg13[%c0_31, %c1_32, %c1_33] : memref<4x18x18xf32, #tpu.memory_space<vmem>>, vector<1x16x16xf32>
    %57 = vector.shape_cast %56 : vector<1x16x16xf32> to vector<16x16xf32>
    %58 = vector.shape_cast %55 : vector<16x16xf32> to vector<1x16x16xf32>
    tpu.vector_store %arg13[%c0_31, %c1_32, %c1_33], %58 {strides = array<i32>} : memref<4x18x18xf32, #tpu.memory_space<vmem>>, vector<1x16x16xf32>,
    %c1_34 = arith.constant 1 : index
    %59 = memref.load %arg3[%c1_34] : memref<4xf32, #tpu.memory_space<smem>>
    %60 = vector.broadcast %59 : f32 to vector<16x16xf32>
    %c9 = arith.constant 9 : index
    %61 = memref.load %arg2[%c9] : memref<36xf32, #tpu.memory_space<smem>>
    %62 = vector.broadcast %61 : f32 to vector<16x16xf32>
    %63 = arith.mulf %62, %7 : vector<16x16xf32>
    %64 = arith.addf %60, %63 : vector<16x16xf32>
    %c10 = arith.constant 10 : index
    %65 = memref.load %arg2[%c10] : memref<36xf32, #tpu.memory_space<smem>>
    %66 = vector.broadcast %65 : f32 to vector<16x16xf32>
    %67 = arith.mulf %66, %8 : vector<16x16xf32>
    %68 = arith.addf %64, %67 : vector<16x16xf32>
    %c11 = arith.constant 11 : index
    %69 = memref.load %arg2[%c11] : memref<36xf32, #tpu.memory_space<smem>>
    %70 = vector.broadcast %69 : f32 to vector<16x16xf32>
    %71 = arith.mulf %70, %9 : vector<16x16xf32>
    %72 = arith.addf %68, %71 : vector<16x16xf32>
    %c12 = arith.constant 12 : index
    %73 = memref.load %arg2[%c12] : memref<36xf32, #tpu.memory_space<smem>>
    %74 = vector.broadcast %73 : f32 to vector<16x16xf32>
    %75 = arith.mulf %74, %10 : vector<16x16xf32>
    %76 = arith.addf %72, %75 : vector<16x16xf32>
    %c13 = arith.constant 13 : index
    %77 = memref.load %arg2[%c13] : memref<36xf32, #tpu.memory_space<smem>>
    %78 = vector.broadcast %77 : f32 to vector<16x16xf32>
    %79 = arith.mulf %78, %11 : vector<16x16xf32>
    %80 = arith.addf %76, %79 : vector<16x16xf32>
    %c14 = arith.constant 14 : index
    %81 = memref.load %arg2[%c14] : memref<36xf32, #tpu.memory_space<smem>>
    %82 = vector.broadcast %81 : f32 to vector<16x16xf32>
    %83 = arith.mulf %82, %12 : vector<16x16xf32>
    %84 = arith.addf %80, %83 : vector<16x16xf32>
    %c15 = arith.constant 15 : index
    %85 = memref.load %arg2[%c15] : memref<36xf32, #tpu.memory_space<smem>>
    %86 = vector.broadcast %85 : f32 to vector<16x16xf32>
    %87 = arith.mulf %86, %13 : vector<16x16xf32>
    %88 = arith.addf %84, %87 : vector<16x16xf32>
    %c16 = arith.constant 16 : index
    %89 = memref.load %arg2[%c16] : memref<36xf32, #tpu.memory_space<smem>>
    %90 = vector.broadcast %89 : f32 to vector<16x16xf32>
    %91 = arith.mulf %90, %14 : vector<16x16xf32>
    %92 = arith.addf %88, %91 : vector<16x16xf32>
    %c17 = arith.constant 17 : index
    %93 = memref.load %arg2[%c17] : memref<36xf32, #tpu.memory_space<smem>>
    %94 = vector.broadcast %93 : f32 to vector<16x16xf32>
    %95 = arith.mulf %94, %15 : vector<16x16xf32>
    %96 = arith.addf %92, %95 : vector<16x16xf32>
    %cst_35 = arith.constant 0.000000e+00 : f32
    %97 = vector.broadcast %cst_35 : f32 to vector<16x16xf32>
    %98 = arith.maximumf %96, %97 : vector<16x16xf32>
    %c1_36 = arith.constant 1 : index
    %c1_37 = arith.constant 1 : index
    %c1_38 = arith.constant 1 : index
    %99 = vector.load %arg13[%c1_36, %c1_37, %c1_38] : memref<4x18x18xf32, #tpu.memory_space<vmem>>, vector<1x16x16xf32>
    %100 = vector.shape_cast %99 : vector<1x16x16xf32> to vector<16x16xf32>
    %101 = vector.shape_cast %98 : vector<16x16xf32> to vector<1x16x16xf32>
    tpu.vector_store %arg13[%c1_36, %c1_37, %c1_38], %101 {strides = array<i32>} : memref<4x18x18xf32, #tpu.memory_space<vmem>>, vector<1x16x16xf32>,
    %c2_39 = arith.constant 2 : index
    %102 = memref.load %arg3[%c2_39] : memref<4xf32, #tpu.memory_space<smem>>
    %103 = vector.broadcast %102 : f32 to vector<16x16xf32>
    %c18 = arith.constant 18 : index
    %104 = memref.load %arg2[%c18] : memref<36xf32, #tpu.memory_space<smem>>
    %105 = vector.broadcast %104 : f32 to vector<16x16xf32>
    %106 = arith.mulf %105, %7 : vector<16x16xf32>
    %107 = arith.addf %103, %106 : vector<16x16xf32>
    %c19 = arith.constant 19 : index
    %108 = memref.load %arg2[%c19] : memref<36xf32, #tpu.memory_space<smem>>
    %109 = vector.broadcast %108 : f32 to vector<16x16xf32>
    %110 = arith.mulf %109, %8 : vector<16x16xf32>
    %111 = arith.addf %107, %110 : vector<16x16xf32>
    %c20 = arith.constant 20 : index
    %112 = memref.load %arg2[%c20] : memref<36xf32, #tpu.memory_space<smem>>
    %113 = vector.broadcast %112 : f32 to vector<16x16xf32>
    %114 = arith.mulf %113, %9 : vector<16x16xf32>
    %115 = arith.addf %111, %114 : vector<16x16xf32>
    %c21 = arith.constant 21 : index
    %116 = memref.load %arg2[%c21] : memref<36xf32, #tpu.memory_space<smem>>
    %117 = vector.broadcast %116 : f32 to vector<16x16xf32>
    %118 = arith.mulf %117, %10 : vector<16x16xf32>
    %119 = arith.addf %115, %118 : vector<16x16xf32>
    %c22 = arith.constant 22 : index
    %120 = memref.load %arg2[%c22] : memref<36xf32, #tpu.memory_space<smem>>
    %121 = vector.broadcast %120 : f32 to vector<16x16xf32>
    %122 = arith.mulf %121, %11 : vector<16x16xf32>
    %123 = arith.addf %119, %122 : vector<16x16xf32>
    %c23 = arith.constant 23 : index
    %124 = memref.load %arg2[%c23] : memref<36xf32, #tpu.memory_space<smem>>
    %125 = vector.broadcast %124 : f32 to vector<16x16xf32>
    %126 = arith.mulf %125, %12 : vector<16x16xf32>
    %127 = arith.addf %123, %126 : vector<16x16xf32>
    %c24 = arith.constant 24 : index
    %128 = memref.load %arg2[%c24] : memref<36xf32, #tpu.memory_space<smem>>
    %129 = vector.broadcast %128 : f32 to vector<16x16xf32>
    %130 = arith.mulf %129, %13 : vector<16x16xf32>
    %131 = arith.addf %127, %130 : vector<16x16xf32>
    %c25 = arith.constant 25 : index
    %132 = memref.load %arg2[%c25] : memref<36xf32, #tpu.memory_space<smem>>
    %133 = vector.broadcast %132 : f32 to vector<16x16xf32>
    %134 = arith.mulf %133, %14 : vector<16x16xf32>
    %135 = arith.addf %131, %134 : vector<16x16xf32>
    %c26 = arith.constant 26 : index
    %136 = memref.load %arg2[%c26] : memref<36xf32, #tpu.memory_space<smem>>
    %137 = vector.broadcast %136 : f32 to vector<16x16xf32>
    %138 = arith.mulf %137, %15 : vector<16x16xf32>
    %139 = arith.addf %135, %138 : vector<16x16xf32>
    %cst_40 = arith.constant 0.000000e+00 : f32
    %140 = vector.broadcast %cst_40 : f32 to vector<16x16xf32>
    %141 = arith.maximumf %139, %140 : vector<16x16xf32>
    %c2_41 = arith.constant 2 : index
    %c1_42 = arith.constant 1 : index
    %c1_43 = arith.constant 1 : index
    %142 = vector.load %arg13[%c2_41, %c1_42, %c1_43] : memref<4x18x18xf32, #tpu.memory_space<vmem>>, vector<1x16x16xf32>
    %143 = vector.shape_cast %142 : vector<1x16x16xf32> to vector<16x16xf32>
    %144 = vector.shape_cast %141 : vector<16x16xf32> to vector<1x16x16xf32>
    tpu.vector_store %arg13[%c2_41, %c1_42, %c1_43], %144 {strides = array<i32>} : memref<4x18x18xf32, #tpu.memory_space<vmem>>, vector<1x16x16xf32>,
    %c3_44 = arith.constant 3 : index
    %145 = memref.load %arg3[%c3_44] : memref<4xf32, #tpu.memory_space<smem>>
    %146 = vector.broadcast %145 : f32 to vector<16x16xf32>
    %c27 = arith.constant 27 : index
    %147 = memref.load %arg2[%c27] : memref<36xf32, #tpu.memory_space<smem>>
    %148 = vector.broadcast %147 : f32 to vector<16x16xf32>
    %149 = arith.mulf %148, %7 : vector<16x16xf32>
    %150 = arith.addf %146, %149 : vector<16x16xf32>
    %c28 = arith.constant 28 : index
    %151 = memref.load %arg2[%c28] : memref<36xf32, #tpu.memory_space<smem>>
    %152 = vector.broadcast %151 : f32 to vector<16x16xf32>
    %153 = arith.mulf %152, %8 : vector<16x16xf32>
    %154 = arith.addf %150, %153 : vector<16x16xf32>
    %c29 = arith.constant 29 : index
    %155 = memref.load %arg2[%c29] : memref<36xf32, #tpu.memory_space<smem>>
    %156 = vector.broadcast %155 : f32 to vector<16x16xf32>
    %157 = arith.mulf %156, %9 : vector<16x16xf32>
    %158 = arith.addf %154, %157 : vector<16x16xf32>
    %c30 = arith.constant 30 : index
    %159 = memref.load %arg2[%c30] : memref<36xf32, #tpu.memory_space<smem>>
    %160 = vector.broadcast %159 : f32 to vector<16x16xf32>
    %161 = arith.mulf %160, %10 : vector<16x16xf32>
    %162 = arith.addf %158, %161 : vector<16x16xf32>
    %c31 = arith.constant 31 : index
    %163 = memref.load %arg2[%c31] : memref<36xf32, #tpu.memory_space<smem>>
    %164 = vector.broadcast %163 : f32 to vector<16x16xf32>
    %165 = arith.mulf %164, %11 : vector<16x16xf32>
    %166 = arith.addf %162, %165 : vector<16x16xf32>
    %c32 = arith.constant 32 : index
    %167 = memref.load %arg2[%c32] : memref<36xf32, #tpu.memory_space<smem>>
    %168 = vector.broadcast %167 : f32 to vector<16x16xf32>
    %169 = arith.mulf %168, %12 : vector<16x16xf32>
    %170 = arith.addf %166, %169 : vector<16x16xf32>
    %c33 = arith.constant 33 : index
    %171 = memref.load %arg2[%c33] : memref<36xf32, #tpu.memory_space<smem>>
    %172 = vector.broadcast %171 : f32 to vector<16x16xf32>
    %173 = arith.mulf %172, %13 : vector<16x16xf32>
    %174 = arith.addf %170, %173 : vector<16x16xf32>
    %c34 = arith.constant 34 : index
    %175 = memref.load %arg2[%c34] : memref<36xf32, #tpu.memory_space<smem>>
    %176 = vector.broadcast %175 : f32 to vector<16x16xf32>
    %177 = arith.mulf %176, %14 : vector<16x16xf32>
    %178 = arith.addf %174, %177 : vector<16x16xf32>
    %c35 = arith.constant 35 : index
    %179 = memref.load %arg2[%c35] : memref<36xf32, #tpu.memory_space<smem>>
    %180 = vector.broadcast %179 : f32 to vector<16x16xf32>
    %181 = arith.mulf %180, %15 : vector<16x16xf32>
    %182 = arith.addf %178, %181 : vector<16x16xf32>
    %cst_45 = arith.constant 0.000000e+00 : f32
    %183 = vector.broadcast %cst_45 : f32 to vector<16x16xf32>
    %184 = arith.maximumf %182, %183 : vector<16x16xf32>
    %c3_46 = arith.constant 3 : index
    %c1_47 = arith.constant 1 : index
    %c1_48 = arith.constant 1 : index
    %185 = vector.load %arg13[%c3_46, %c1_47, %c1_48] : memref<4x18x18xf32, #tpu.memory_space<vmem>>, vector<1x16x16xf32>
    %186 = vector.shape_cast %185 : vector<1x16x16xf32> to vector<16x16xf32>
    %187 = vector.shape_cast %184 : vector<16x16xf32> to vector<1x16x16xf32>
    tpu.vector_store %arg13[%c3_46, %c1_47, %c1_48], %187 {strides = array<i32>} : memref<4x18x18xf32, #tpu.memory_space<vmem>>, vector<1x16x16xf32>,
    %c0_49 = arith.constant 0 : index
    %188 = memref.load %arg5[%c0_49] : memref<1xf32, #tpu.memory_space<smem>>
    %189 = vector.broadcast %188 : f32 to vector<16x16xf32>
    %c0_50 = arith.constant 0 : index
    %190 = memref.load %arg4[%c0_50] : memref<36xf32, #tpu.memory_space<smem>>
    %c0_51 = arith.constant 0 : index
    %c0_52 = arith.constant 0 : index
    %c0_53 = arith.constant 0 : index
    %191 = vector.load %arg13[%c0_51, %c0_52, %c0_53] : memref<4x18x18xf32, #tpu.memory_space<vmem>>, vector<1x16x16xf32>
    %192 = vector.shape_cast %191 : vector<1x16x16xf32> to vector<16x16xf32>
    %193 = vector.broadcast %190 : f32 to vector<16x16xf32>
    %194 = arith.mulf %193, %192 : vector<16x16xf32>
    %195 = arith.addf %189, %194 : vector<16x16xf32>
    %c1_54 = arith.constant 1 : index
    %196 = memref.load %arg4[%c1_54] : memref<36xf32, #tpu.memory_space<smem>>
    %c0_55 = arith.constant 0 : index
    %c0_56 = arith.constant 0 : index
    %c1_57 = arith.constant 1 : index
    %197 = vector.load %arg13[%c0_55, %c0_56, %c1_57] : memref<4x18x18xf32, #tpu.memory_space<vmem>>, vector<1x16x16xf32>
    %198 = vector.shape_cast %197 : vector<1x16x16xf32> to vector<16x16xf32>
    %199 = vector.broadcast %196 : f32 to vector<16x16xf32>
    %200 = arith.mulf %199, %198 : vector<16x16xf32>
    %201 = arith.addf %195, %200 : vector<16x16xf32>
    %c2_58 = arith.constant 2 : index
    %202 = memref.load %arg4[%c2_58] : memref<36xf32, #tpu.memory_space<smem>>
    %c0_59 = arith.constant 0 : index
    %c0_60 = arith.constant 0 : index
    %c2_61 = arith.constant 2 : index
    %203 = vector.load %arg13[%c0_59, %c0_60, %c2_61] : memref<4x18x18xf32, #tpu.memory_space<vmem>>, vector<1x16x16xf32>
    %204 = vector.shape_cast %203 : vector<1x16x16xf32> to vector<16x16xf32>
    %205 = vector.broadcast %202 : f32 to vector<16x16xf32>
    %206 = arith.mulf %205, %204 : vector<16x16xf32>
    %207 = arith.addf %201, %206 : vector<16x16xf32>
    %c3_62 = arith.constant 3 : index
    %208 = memref.load %arg4[%c3_62] : memref<36xf32, #tpu.memory_space<smem>>
    %c0_63 = arith.constant 0 : index
    %c1_64 = arith.constant 1 : index
    %c0_65 = arith.constant 0 : index
    %209 = vector.load %arg13[%c0_63, %c1_64, %c0_65] : memref<4x18x18xf32, #tpu.memory_space<vmem>>, vector<1x16x16xf32>
    %210 = vector.shape_cast %209 : vector<1x16x16xf32> to vector<16x16xf32>
    %211 = vector.broadcast %208 : f32 to vector<16x16xf32>
    %212 = arith.mulf %211, %210 : vector<16x16xf32>
    %213 = arith.addf %207, %212 : vector<16x16xf32>
    %c4_66 = arith.constant 4 : index
    %214 = memref.load %arg4[%c4_66] : memref<36xf32, #tpu.memory_space<smem>>
    %c0_67 = arith.constant 0 : index
    %c1_68 = arith.constant 1 : index
    %c1_69 = arith.constant 1 : index
    %215 = vector.load %arg13[%c0_67, %c1_68, %c1_69] : memref<4x18x18xf32, #tpu.memory_space<vmem>>, vector<1x16x16xf32>
    %216 = vector.shape_cast %215 : vector<1x16x16xf32> to vector<16x16xf32>
    %217 = vector.broadcast %214 : f32 to vector<16x16xf32>
    %218 = arith.mulf %217, %216 : vector<16x16xf32>
    %219 = arith.addf %213, %218 : vector<16x16xf32>
    %c5_70 = arith.constant 5 : index
    %220 = memref.load %arg4[%c5_70] : memref<36xf32, #tpu.memory_space<smem>>
    %c0_71 = arith.constant 0 : index
    %c1_72 = arith.constant 1 : index
    %c2_73 = arith.constant 2 : index
    %221 = vector.load %arg13[%c0_71, %c1_72, %c2_73] : memref<4x18x18xf32, #tpu.memory_space<vmem>>, vector<1x16x16xf32>
    %222 = vector.shape_cast %221 : vector<1x16x16xf32> to vector<16x16xf32>
    %223 = vector.broadcast %220 : f32 to vector<16x16xf32>
    %224 = arith.mulf %223, %222 : vector<16x16xf32>
    %225 = arith.addf %219, %224 : vector<16x16xf32>
    %c6_74 = arith.constant 6 : index
    %226 = memref.load %arg4[%c6_74] : memref<36xf32, #tpu.memory_space<smem>>
    %c0_75 = arith.constant 0 : index
    %c2_76 = arith.constant 2 : index
    %c0_77 = arith.constant 0 : index
    %227 = vector.load %arg13[%c0_75, %c2_76, %c0_77] : memref<4x18x18xf32, #tpu.memory_space<vmem>>, vector<1x16x16xf32>
    %228 = vector.shape_cast %227 : vector<1x16x16xf32> to vector<16x16xf32>
    %229 = vector.broadcast %226 : f32 to vector<16x16xf32>
    %230 = arith.mulf %229, %228 : vector<16x16xf32>
    %231 = arith.addf %225, %230 : vector<16x16xf32>
    %c7_78 = arith.constant 7 : index
    %232 = memref.load %arg4[%c7_78] : memref<36xf32, #tpu.memory_space<smem>>
    %c0_79 = arith.constant 0 : index
    %c2_80 = arith.constant 2 : index
    %c1_81 = arith.constant 1 : index
    %233 = vector.load %arg13[%c0_79, %c2_80, %c1_81] : memref<4x18x18xf32, #tpu.memory_space<vmem>>, vector<1x16x16xf32>
    %234 = vector.shape_cast %233 : vector<1x16x16xf32> to vector<16x16xf32>
    %235 = vector.broadcast %232 : f32 to vector<16x16xf32>
    %236 = arith.mulf %235, %234 : vector<16x16xf32>
    %237 = arith.addf %231, %236 : vector<16x16xf32>
    %c8_82 = arith.constant 8 : index
    %238 = memref.load %arg4[%c8_82] : memref<36xf32, #tpu.memory_space<smem>>
    %c0_83 = arith.constant 0 : index
    %c2_84 = arith.constant 2 : index
    %c2_85 = arith.constant 2 : index
    %239 = vector.load %arg13[%c0_83, %c2_84, %c2_85] : memref<4x18x18xf32, #tpu.memory_space<vmem>>, vector<1x16x16xf32>
    %240 = vector.shape_cast %239 : vector<1x16x16xf32> to vector<16x16xf32>
    %241 = vector.broadcast %238 : f32 to vector<16x16xf32>
    %242 = arith.mulf %241, %240 : vector<16x16xf32>
    %243 = arith.addf %237, %242 : vector<16x16xf32>
    %c9_86 = arith.constant 9 : index
    %244 = memref.load %arg4[%c9_86] : memref<36xf32, #tpu.memory_space<smem>>
    %c1_87 = arith.constant 1 : index
    %c0_88 = arith.constant 0 : index
    %c0_89 = arith.constant 0 : index
    %245 = vector.load %arg13[%c1_87, %c0_88, %c0_89] : memref<4x18x18xf32, #tpu.memory_space<vmem>>, vector<1x16x16xf32>
    %246 = vector.shape_cast %245 : vector<1x16x16xf32> to vector<16x16xf32>
    %247 = vector.broadcast %244 : f32 to vector<16x16xf32>
    %248 = arith.mulf %247, %246 : vector<16x16xf32>
    %249 = arith.addf %243, %248 : vector<16x16xf32>
    %c10_90 = arith.constant 10 : index
    %250 = memref.load %arg4[%c10_90] : memref<36xf32, #tpu.memory_space<smem>>
    %c1_91 = arith.constant 1 : index
    %c0_92 = arith.constant 0 : index
    %c1_93 = arith.constant 1 : index
    %251 = vector.load %arg13[%c1_91, %c0_92, %c1_93] : memref<4x18x18xf32, #tpu.memory_space<vmem>>, vector<1x16x16xf32>
    %252 = vector.shape_cast %251 : vector<1x16x16xf32> to vector<16x16xf32>
    %253 = vector.broadcast %250 : f32 to vector<16x16xf32>
    %254 = arith.mulf %253, %252 : vector<16x16xf32>
    %255 = arith.addf %249, %254 : vector<16x16xf32>
    %c11_94 = arith.constant 11 : index
    %256 = memref.load %arg4[%c11_94] : memref<36xf32, #tpu.memory_space<smem>>
    %c1_95 = arith.constant 1 : index
    %c0_96 = arith.constant 0 : index
    %c2_97 = arith.constant 2 : index
    %257 = vector.load %arg13[%c1_95, %c0_96, %c2_97] : memref<4x18x18xf32, #tpu.memory_space<vmem>>, vector<1x16x16xf32>
    %258 = vector.shape_cast %257 : vector<1x16x16xf32> to vector<16x16xf32>
    %259 = vector.broadcast %256 : f32 to vector<16x16xf32>
    %260 = arith.mulf %259, %258 : vector<16x16xf32>
    %261 = arith.addf %255, %260 : vector<16x16xf32>
    %c12_98 = arith.constant 12 : index
    %262 = memref.load %arg4[%c12_98] : memref<36xf32, #tpu.memory_space<smem>>
    %c1_99 = arith.constant 1 : index
    %c1_100 = arith.constant 1 : index
    %c0_101 = arith.constant 0 : index
    %263 = vector.load %arg13[%c1_99, %c1_100, %c0_101] : memref<4x18x18xf32, #tpu.memory_space<vmem>>, vector<1x16x16xf32>
    %264 = vector.shape_cast %263 : vector<1x16x16xf32> to vector<16x16xf32>
    %265 = vector.broadcast %262 : f32 to vector<16x16xf32>
    %266 = arith.mulf %265, %264 : vector<16x16xf32>
    %267 = arith.addf %261, %266 : vector<16x16xf32>
    %c13_102 = arith.constant 13 : index
    %268 = memref.load %arg4[%c13_102] : memref<36xf32, #tpu.memory_space<smem>>
    %c1_103 = arith.constant 1 : index
    %c1_104 = arith.constant 1 : index
    %c1_105 = arith.constant 1 : index
    %269 = vector.load %arg13[%c1_103, %c1_104, %c1_105] : memref<4x18x18xf32, #tpu.memory_space<vmem>>, vector<1x16x16xf32>
    %270 = vector.shape_cast %269 : vector<1x16x16xf32> to vector<16x16xf32>
    %271 = vector.broadcast %268 : f32 to vector<16x16xf32>
    %272 = arith.mulf %271, %270 : vector<16x16xf32>
    %273 = arith.addf %267, %272 : vector<16x16xf32>
    %c14_106 = arith.constant 14 : index
    %274 = memref.load %arg4[%c14_106] : memref<36xf32, #tpu.memory_space<smem>>
    %c1_107 = arith.constant 1 : index
    %c1_108 = arith.constant 1 : index
    %c2_109 = arith.constant 2 : index
    %275 = vector.load %arg13[%c1_107, %c1_108, %c2_109] : memref<4x18x18xf32, #tpu.memory_space<vmem>>, vector<1x16x16xf32>
    %276 = vector.shape_cast %275 : vector<1x16x16xf32> to vector<16x16xf32>
    %277 = vector.broadcast %274 : f32 to vector<16x16xf32>
    %278 = arith.mulf %277, %276 : vector<16x16xf32>
    %279 = arith.addf %273, %278 : vector<16x16xf32>
    %c15_110 = arith.constant 15 : index
    %280 = memref.load %arg4[%c15_110] : memref<36xf32, #tpu.memory_space<smem>>
    %c1_111 = arith.constant 1 : index
    %c2_112 = arith.constant 2 : index
    %c0_113 = arith.constant 0 : index
    %281 = vector.load %arg13[%c1_111, %c2_112, %c0_113] : memref<4x18x18xf32, #tpu.memory_space<vmem>>, vector<1x16x16xf32>
    %282 = vector.shape_cast %281 : vector<1x16x16xf32> to vector<16x16xf32>
    %283 = vector.broadcast %280 : f32 to vector<16x16xf32>
    %284 = arith.mulf %283, %282 : vector<16x16xf32>
    %285 = arith.addf %279, %284 : vector<16x16xf32>
    %c16_114 = arith.constant 16 : index
    %286 = memref.load %arg4[%c16_114] : memref<36xf32, #tpu.memory_space<smem>>
    %c1_115 = arith.constant 1 : index
    %c2_116 = arith.constant 2 : index
    %c1_117 = arith.constant 1 : index
    %287 = vector.load %arg13[%c1_115, %c2_116, %c1_117] : memref<4x18x18xf32, #tpu.memory_space<vmem>>, vector<1x16x16xf32>
    %288 = vector.shape_cast %287 : vector<1x16x16xf32> to vector<16x16xf32>
    %289 = vector.broadcast %286 : f32 to vector<16x16xf32>
    %290 = arith.mulf %289, %288 : vector<16x16xf32>
    %291 = arith.addf %285, %290 : vector<16x16xf32>
    %c17_118 = arith.constant 17 : index
    %292 = memref.load %arg4[%c17_118] : memref<36xf32, #tpu.memory_space<smem>>
    %c1_119 = arith.constant 1 : index
    %c2_120 = arith.constant 2 : index
    %c2_121 = arith.constant 2 : index
    %293 = vector.load %arg13[%c1_119, %c2_120, %c2_121] : memref<4x18x18xf32, #tpu.memory_space<vmem>>, vector<1x16x16xf32>
    %294 = vector.shape_cast %293 : vector<1x16x16xf32> to vector<16x16xf32>
    %295 = vector.broadcast %292 : f32 to vector<16x16xf32>
    %296 = arith.mulf %295, %294 : vector<16x16xf32>
    %297 = arith.addf %291, %296 : vector<16x16xf32>
    %c18_122 = arith.constant 18 : index
    %298 = memref.load %arg4[%c18_122] : memref<36xf32, #tpu.memory_space<smem>>
    %c2_123 = arith.constant 2 : index
    %c0_124 = arith.constant 0 : index
    %c0_125 = arith.constant 0 : index
    %299 = vector.load %arg13[%c2_123, %c0_124, %c0_125] : memref<4x18x18xf32, #tpu.memory_space<vmem>>, vector<1x16x16xf32>
    %300 = vector.shape_cast %299 : vector<1x16x16xf32> to vector<16x16xf32>
    %301 = vector.broadcast %298 : f32 to vector<16x16xf32>
    %302 = arith.mulf %301, %300 : vector<16x16xf32>
    %303 = arith.addf %297, %302 : vector<16x16xf32>
    %c19_126 = arith.constant 19 : index
    %304 = memref.load %arg4[%c19_126] : memref<36xf32, #tpu.memory_space<smem>>
    %c2_127 = arith.constant 2 : index
    %c0_128 = arith.constant 0 : index
    %c1_129 = arith.constant 1 : index
    %305 = vector.load %arg13[%c2_127, %c0_128, %c1_129] : memref<4x18x18xf32, #tpu.memory_space<vmem>>, vector<1x16x16xf32>
    %306 = vector.shape_cast %305 : vector<1x16x16xf32> to vector<16x16xf32>
    %307 = vector.broadcast %304 : f32 to vector<16x16xf32>
    %308 = arith.mulf %307, %306 : vector<16x16xf32>
    %309 = arith.addf %303, %308 : vector<16x16xf32>
    %c20_130 = arith.constant 20 : index
    %310 = memref.load %arg4[%c20_130] : memref<36xf32, #tpu.memory_space<smem>>
    %c2_131 = arith.constant 2 : index
    %c0_132 = arith.constant 0 : index
    %c2_133 = arith.constant 2 : index
    %311 = vector.load %arg13[%c2_131, %c0_132, %c2_133] : memref<4x18x18xf32, #tpu.memory_space<vmem>>, vector<1x16x16xf32>
    %312 = vector.shape_cast %311 : vector<1x16x16xf32> to vector<16x16xf32>
    %313 = vector.broadcast %310 : f32 to vector<16x16xf32>
    %314 = arith.mulf %313, %312 : vector<16x16xf32>
    %315 = arith.addf %309, %314 : vector<16x16xf32>
    %c21_134 = arith.constant 21 : index
    %316 = memref.load %arg4[%c21_134] : memref<36xf32, #tpu.memory_space<smem>>
    %c2_135 = arith.constant 2 : index
    %c1_136 = arith.constant 1 : index
    %c0_137 = arith.constant 0 : index
    %317 = vector.load %arg13[%c2_135, %c1_136, %c0_137] : memref<4x18x18xf32, #tpu.memory_space<vmem>>, vector<1x16x16xf32>
    %318 = vector.shape_cast %317 : vector<1x16x16xf32> to vector<16x16xf32>
    %319 = vector.broadcast %316 : f32 to vector<16x16xf32>
    %320 = arith.mulf %319, %318 : vector<16x16xf32>
    %321 = arith.addf %315, %320 : vector<16x16xf32>
    %c22_138 = arith.constant 22 : index
    %322 = memref.load %arg4[%c22_138] : memref<36xf32, #tpu.memory_space<smem>>
    %c2_139 = arith.constant 2 : index
    %c1_140 = arith.constant 1 : index
    %c1_141 = arith.constant 1 : index
    %323 = vector.load %arg13[%c2_139, %c1_140, %c1_141] : memref<4x18x18xf32, #tpu.memory_space<vmem>>, vector<1x16x16xf32>
    %324 = vector.shape_cast %323 : vector<1x16x16xf32> to vector<16x16xf32>
    %325 = vector.broadcast %322 : f32 to vector<16x16xf32>
    %326 = arith.mulf %325, %324 : vector<16x16xf32>
    %327 = arith.addf %321, %326 : vector<16x16xf32>
    %c23_142 = arith.constant 23 : index
    %328 = memref.load %arg4[%c23_142] : memref<36xf32, #tpu.memory_space<smem>>
    %c2_143 = arith.constant 2 : index
    %c1_144 = arith.constant 1 : index
    %c2_145 = arith.constant 2 : index
    %329 = vector.load %arg13[%c2_143, %c1_144, %c2_145] : memref<4x18x18xf32, #tpu.memory_space<vmem>>, vector<1x16x16xf32>
    %330 = vector.shape_cast %329 : vector<1x16x16xf32> to vector<16x16xf32>
    %331 = vector.broadcast %328 : f32 to vector<16x16xf32>
    %332 = arith.mulf %331, %330 : vector<16x16xf32>
    %333 = arith.addf %327, %332 : vector<16x16xf32>
    %c24_146 = arith.constant 24 : index
    %334 = memref.load %arg4[%c24_146] : memref<36xf32, #tpu.memory_space<smem>>
    %c2_147 = arith.constant 2 : index
    %c2_148 = arith.constant 2 : index
    %c0_149 = arith.constant 0 : index
    %335 = vector.load %arg13[%c2_147, %c2_148, %c0_149] : memref<4x18x18xf32, #tpu.memory_space<vmem>>, vector<1x16x16xf32>
    %336 = vector.shape_cast %335 : vector<1x16x16xf32> to vector<16x16xf32>
    %337 = vector.broadcast %334 : f32 to vector<16x16xf32>
    %338 = arith.mulf %337, %336 : vector<16x16xf32>
    %339 = arith.addf %333, %338 : vector<16x16xf32>
    %c25_150 = arith.constant 25 : index
    %340 = memref.load %arg4[%c25_150] : memref<36xf32, #tpu.memory_space<smem>>
    %c2_151 = arith.constant 2 : index
    %c2_152 = arith.constant 2 : index
    %c1_153 = arith.constant 1 : index
    %341 = vector.load %arg13[%c2_151, %c2_152, %c1_153] : memref<4x18x18xf32, #tpu.memory_space<vmem>>, vector<1x16x16xf32>
    %342 = vector.shape_cast %341 : vector<1x16x16xf32> to vector<16x16xf32>
    %343 = vector.broadcast %340 : f32 to vector<16x16xf32>
    %344 = arith.mulf %343, %342 : vector<16x16xf32>
    %345 = arith.addf %339, %344 : vector<16x16xf32>
    %c26_154 = arith.constant 26 : index
    %346 = memref.load %arg4[%c26_154] : memref<36xf32, #tpu.memory_space<smem>>
    %c2_155 = arith.constant 2 : index
    %c2_156 = arith.constant 2 : index
    %c2_157 = arith.constant 2 : index
    %347 = vector.load %arg13[%c2_155, %c2_156, %c2_157] : memref<4x18x18xf32, #tpu.memory_space<vmem>>, vector<1x16x16xf32>
    %348 = vector.shape_cast %347 : vector<1x16x16xf32> to vector<16x16xf32>
    %349 = vector.broadcast %346 : f32 to vector<16x16xf32>
    %350 = arith.mulf %349, %348 : vector<16x16xf32>
    %351 = arith.addf %345, %350 : vector<16x16xf32>
    %c27_158 = arith.constant 27 : index
    %352 = memref.load %arg4[%c27_158] : memref<36xf32, #tpu.memory_space<smem>>
    %c3_159 = arith.constant 3 : index
    %c0_160 = arith.constant 0 : index
    %c0_161 = arith.constant 0 : index
    %353 = vector.load %arg13[%c3_159, %c0_160, %c0_161] : memref<4x18x18xf32, #tpu.memory_space<vmem>>, vector<1x16x16xf32>
    %354 = vector.shape_cast %353 : vector<1x16x16xf32> to vector<16x16xf32>
    %355 = vector.broadcast %352 : f32 to vector<16x16xf32>
    %356 = arith.mulf %355, %354 : vector<16x16xf32>
    %357 = arith.addf %351, %356 : vector<16x16xf32>
    %c28_162 = arith.constant 28 : index
    %358 = memref.load %arg4[%c28_162] : memref<36xf32, #tpu.memory_space<smem>>
    %c3_163 = arith.constant 3 : index
    %c0_164 = arith.constant 0 : index
    %c1_165 = arith.constant 1 : index
    %359 = vector.load %arg13[%c3_163, %c0_164, %c1_165] : memref<4x18x18xf32, #tpu.memory_space<vmem>>, vector<1x16x16xf32>
    %360 = vector.shape_cast %359 : vector<1x16x16xf32> to vector<16x16xf32>
    %361 = vector.broadcast %358 : f32 to vector<16x16xf32>
    %362 = arith.mulf %361, %360 : vector<16x16xf32>
    %363 = arith.addf %357, %362 : vector<16x16xf32>
    %c29_166 = arith.constant 29 : index
    %364 = memref.load %arg4[%c29_166] : memref<36xf32, #tpu.memory_space<smem>>
    %c3_167 = arith.constant 3 : index
    %c0_168 = arith.constant 0 : index
    %c2_169 = arith.constant 2 : index
    %365 = vector.load %arg13[%c3_167, %c0_168, %c2_169] : memref<4x18x18xf32, #tpu.memory_space<vmem>>, vector<1x16x16xf32>
    %366 = vector.shape_cast %365 : vector<1x16x16xf32> to vector<16x16xf32>
    %367 = vector.broadcast %364 : f32 to vector<16x16xf32>
    %368 = arith.mulf %367, %366 : vector<16x16xf32>
    %369 = arith.addf %363, %368 : vector<16x16xf32>
    %c30_170 = arith.constant 30 : index
    %370 = memref.load %arg4[%c30_170] : memref<36xf32, #tpu.memory_space<smem>>
    %c3_171 = arith.constant 3 : index
    %c1_172 = arith.constant 1 : index
    %c0_173 = arith.constant 0 : index
    %371 = vector.load %arg13[%c3_171, %c1_172, %c0_173] : memref<4x18x18xf32, #tpu.memory_space<vmem>>, vector<1x16x16xf32>
    %372 = vector.shape_cast %371 : vector<1x16x16xf32> to vector<16x16xf32>
    %373 = vector.broadcast %370 : f32 to vector<16x16xf32>
    %374 = arith.mulf %373, %372 : vector<16x16xf32>
    %375 = arith.addf %369, %374 : vector<16x16xf32>
    %c31_174 = arith.constant 31 : index
    %376 = memref.load %arg4[%c31_174] : memref<36xf32, #tpu.memory_space<smem>>
    %c3_175 = arith.constant 3 : index
    %c1_176 = arith.constant 1 : index
    %c1_177 = arith.constant 1 : index
    %377 = vector.load %arg13[%c3_175, %c1_176, %c1_177] : memref<4x18x18xf32, #tpu.memory_space<vmem>>, vector<1x16x16xf32>
    %378 = vector.shape_cast %377 : vector<1x16x16xf32> to vector<16x16xf32>
    %379 = vector.broadcast %376 : f32 to vector<16x16xf32>
    %380 = arith.mulf %379, %378 : vector<16x16xf32>
    %381 = arith.addf %375, %380 : vector<16x16xf32>
    %c32_178 = arith.constant 32 : index
    %382 = memref.load %arg4[%c32_178] : memref<36xf32, #tpu.memory_space<smem>>
    %c3_179 = arith.constant 3 : index
    %c1_180 = arith.constant 1 : index
    %c2_181 = arith.constant 2 : index
    %383 = vector.load %arg13[%c3_179, %c1_180, %c2_181] : memref<4x18x18xf32, #tpu.memory_space<vmem>>, vector<1x16x16xf32>
    %384 = vector.shape_cast %383 : vector<1x16x16xf32> to vector<16x16xf32>
    %385 = vector.broadcast %382 : f32 to vector<16x16xf32>
    %386 = arith.mulf %385, %384 : vector<16x16xf32>
    %387 = arith.addf %381, %386 : vector<16x16xf32>
    %c33_182 = arith.constant 33 : index
    %388 = memref.load %arg4[%c33_182] : memref<36xf32, #tpu.memory_space<smem>>
    %c3_183 = arith.constant 3 : index
    %c2_184 = arith.constant 2 : index
    %c0_185 = arith.constant 0 : index
    %389 = vector.load %arg13[%c3_183, %c2_184, %c0_185] : memref<4x18x18xf32, #tpu.memory_space<vmem>>, vector<1x16x16xf32>
    %390 = vector.shape_cast %389 : vector<1x16x16xf32> to vector<16x16xf32>
    %391 = vector.broadcast %388 : f32 to vector<16x16xf32>
    %392 = arith.mulf %391, %390 : vector<16x16xf32>
    %393 = arith.addf %387, %392 : vector<16x16xf32>
    %c34_186 = arith.constant 34 : index
    %394 = memref.load %arg4[%c34_186] : memref<36xf32, #tpu.memory_space<smem>>
    %c3_187 = arith.constant 3 : index
    %c2_188 = arith.constant 2 : index
    %c1_189 = arith.constant 1 : index
    %395 = vector.load %arg13[%c3_187, %c2_188, %c1_189] : memref<4x18x18xf32, #tpu.memory_space<vmem>>, vector<1x16x16xf32>
    %396 = vector.shape_cast %395 : vector<1x16x16xf32> to vector<16x16xf32>
    %397 = vector.broadcast %394 : f32 to vector<16x16xf32>
    %398 = arith.mulf %397, %396 : vector<16x16xf32>
    %399 = arith.addf %393, %398 : vector<16x16xf32>
    %c35_190 = arith.constant 35 : index
    %400 = memref.load %arg4[%c35_190] : memref<36xf32, #tpu.memory_space<smem>>
    %c3_191 = arith.constant 3 : index
    %c2_192 = arith.constant 2 : index
    %c2_193 = arith.constant 2 : index
    %401 = vector.load %arg13[%c3_191, %c2_192, %c2_193] : memref<4x18x18xf32, #tpu.memory_space<vmem>>, vector<1x16x16xf32>
    %402 = vector.shape_cast %401 : vector<1x16x16xf32> to vector<16x16xf32>
    %403 = vector.broadcast %400 : f32 to vector<16x16xf32>
    %404 = arith.mulf %403, %402 : vector<16x16xf32>
    %405 = arith.addf %399, %404 : vector<16x16xf32>
    %c0_194 = arith.constant 0 : index
    %406 = memref.load %arg6[%c0_194] : memref<2xf32, #tpu.memory_space<smem>>
    %407 = vector.broadcast %406 : f32 to vector<16x16xf32>
    %408 = arith.mulf %407, %405 : vector<16x16xf32>
    %c1_195 = arith.constant 1 : index
    %409 = memref.load %arg6[%c1_195] : memref<2xf32, #tpu.memory_space<smem>>
    %410 = arith.index_cast %arg0 : i32 to index
    %411 = memref.load %arg1[%410] : memref<2xf32, #tpu.memory_space<smem>>
    %c0_196 = arith.constant 0 : index
    %c0_197 = arith.constant 0 : index
    %c0_198 = arith.constant 0 : index
    %412 = vector.load %arg8[%c0_196, %c0_197, %c0_198] : memref<1x16x16xf32, #tpu.memory_space<vmem>>, vector<1x16x16xf32>
    %413 = vector.shape_cast %412 : vector<1x16x16xf32> to vector<16x16xf32>
    %414 = vector.broadcast %411 : f32 to vector<16x16xf32>
    %415 = arith.mulf %414, %413 : vector<16x16xf32>
    %416 = arith.addf %408, %415 : vector<16x16xf32>
    %417 = vector.broadcast %409 : f32 to vector<16x16xf32>
    %418 = arith.mulf %417, %416 : vector<16x16xf32>
    %c0_199 = arith.constant 0 : index
    %c0_200 = arith.constant 0 : index
    %c0_201 = arith.constant 0 : index
    %419 = vector.load %arg9[%c0_199, %c0_200, %c0_201] : memref<1x16x16xf32, #tpu.memory_space<vmem>>, vector<1x16x16xf32>
    %420 = vector.shape_cast %419 : vector<1x16x16xf32> to vector<16x16xf32>
    %421 = vector.shape_cast %405 : vector<16x16xf32> to vector<1x16x16xf32>
    tpu.vector_store %arg9[%c0_199, %c0_200, %c0_201], %421 {strides = array<i32>} : memref<1x16x16xf32, #tpu.memory_space<vmem>>, vector<1x16x16xf32>,
    %c0_202 = arith.constant 0 : index
    %c0_203 = arith.constant 0 : index
    %c0_204 = arith.constant 0 : index
    %422 = vector.load %arg10[%c0_202, %c0_203, %c0_204] : memref<1x16x16xf32, #tpu.memory_space<vmem>>, vector<1x16x16xf32>
    %423 = vector.shape_cast %422 : vector<1x16x16xf32> to vector<16x16xf32>
    %424 = vector.shape_cast %408 : vector<16x16xf32> to vector<1x16x16xf32>
    tpu.vector_store %arg10[%c0_202, %c0_203, %c0_204], %424 {strides = array<i32>} : memref<1x16x16xf32, #tpu.memory_space<vmem>>, vector<1x16x16xf32>,
    %c0_205 = arith.constant 0 : index
    %c0_206 = arith.constant 0 : index
    %c0_207 = arith.constant 0 : index
    %425 = vector.load %arg11[%c0_205, %c0_206, %c0_207] : memref<1x16x16xf32, #tpu.memory_space<vmem>>, vector<1x16x16xf32>
    %426 = vector.shape_cast %425 : vector<1x16x16xf32> to vector<16x16xf32>
    %427 = vector.shape_cast %418 : vector<16x16xf32> to vector<1x16x16xf32>
    tpu.vector_store %arg11[%c0_205, %c0_206, %c0_207], %427 {strides = array<i32>} : memref<1x16x16xf32, #tpu.memory_space<vmem>>, vector<1x16x16xf32>,
    return
  }
  func.func @transform_0(%arg0: i32) -> i32 {
    %c0_i32 = arith.constant 0 : i32
    %c0_i32_0 = arith.constant 0 : i32
    return %c0_i32 : i32
  }
  func.func @transform_1(%arg0: i32) -> i32 {
    %c0_i32 = arith.constant 0 : i32
    %c0_i32_0 = arith.constant 0 : i32
    return %c0_i32 : i32
  }
  func.func @transform_2(%arg0: i32) -> i32 {
    %c0_i32 = arith.constant 0 : i32
    %c0_i32_0 = arith.constant 0 : i32
    return %c0_i32 : i32
  }
  func.func @transform_3(%arg0: i32) -> i32 {
    %c0_i32 = arith.constant 0 : i32
    %c0_i32_0 = arith.constant 0 : i32
    return %c0_i32 : i32
  }
  func.func @transform_4(%arg0: i32) -> i32 {
    %c0_i32 = arith.constant 0 : i32
    %c0_i32_0 = arith.constant 0 : i32
    return %c0_i32 : i32
  }
  func.func @transform_5(%arg0: i32) -> i32 {
    %c0_i32 = arith.constant 0 : i32
    %c0_i32_0 = arith.constant 0 : i32
    return %c0_i32 : i32
  }
  func.func @transform_6(%arg0: i32) -> (i32, i32, i32) {
    %c0_i32 = arith.constant 0 : i32
    %c0_i32_0 = arith.constant 0 : i32
    %c0_i32_1 = arith.constant 0 : i32
    return %arg0, %c0_i32, %c0_i32_0 : i32, i32, i32
  }
  func.func @transform_7(%arg0: i32) -> (i32, i32, i32) {
    %c0_i32 = arith.constant 0 : i32
    %c0_i32_0 = arith.constant 0 : i32
    %c0_i32_1 = arith.constant 0 : i32
    return %arg0, %c0_i32, %c0_i32_0 : i32, i32, i32
  }
  func.func @transform_8(%arg0: i32) -> (i32, i32, i32) {
    %c0_i32 = arith.constant 0 : i32
    %c0_i32_0 = arith.constant 0 : i32
    %c0_i32_1 = arith.constant 0 : i32
    return %arg0, %c0_i32, %c0_i32_0 : i32, i32, i32
  }
  func.func @transform_9(%arg0: i32) -> (i32, i32, i32) {
    %c0_i32 = arith.constant 0 : i32
    %c0_i32_0 = arith.constant 0 : i32
    %c0_i32_1 = arith.constant 0 : i32
    return %arg0, %c0_i32, %c0_i32_0 : i32, i32, i32
  }
  func.func @transform_10(%arg0: i32) -> (i32, i32, i32) {
    %c0_i32 = arith.constant 0 : i32
    %c0_i32_0 = arith.constant 0 : i32
    %c0_i32_1 = arith.constant 0 : i32
    return %arg0, %c0_i32, %c0_i32_0 : i32, i32, i32
  }
}

</mosaic_0001>

<llo_original>
// kernel: tpu_custom_call.1
$region0: #{tpu_custom_call.1}
  #allocation0 [shape = 'u32[]', space=smem, size = 0x4, offset = 0x4, fixed_abs, tag = 'smem constant byte address 0x4 - core index']
  #allocation1 [shape = 'u32[144,128]{1,0:T(1,128)}', space=vmem, size = 0x12000, scoped, tag = 'internal scratch']
  #allocation2 [shape = 'f32[18,18]{1,0:T(8,128)}', space=vmem, size = 0x3000, scoped, tag = 'scratch operand']
  #allocation3 [shape = 'f32[4,18,18]{2,1,0:T(8,128)}', space=vmem, size = 0xc000, scoped, tag = 'scratch operand']
  #allocation4 [shape = 'f32[1]{0:T(128)S(6)}', space=smem, size = 0x200, scoped, tag = 'scoped memory for tpu_custom_call.1']
  %s0 = inlined_call_operand.vmem [shape: f32[2], index: 0, kind: input, shape index: {}]
  %s1 = inlined_call_operand.vmem [shape: f32[36], index: 1, kind: input, shape index: {}]
  %s2 = inlined_call_operand.vmem [shape: f32[4], index: 2, kind: input, shape index: {}]
  %s3 = inlined_call_operand.vmem [shape: f32[36], index: 3, kind: input, shape index: {}]
  %s4 = inlined_call_operand.<no memory space> [shape: f32[1], index: 4, kind: input, shape index: {}]
  %s5 = inlined_call_operand.vmem [shape: f32[2], index: 5, kind: input, shape index: {}]
  %s6 = inlined_call_operand.hbm [shape: f32[2,16,16], index: 6, kind: input, shape index: {}]
  %s7 = inlined_call_operand.hbm [shape: f32[2,16,16], index: 7, kind: input, shape index: {}]
  %s8 = inlined_call_operand.hbm [shape: f32[2,16,16], index: 8, kind: output, shape index: {0}]
  %s9 = inlined_call_operand.hbm [shape: f32[2,16,16], index: 9, kind: output, shape index: {1}]
  %s10 = inlined_call_operand.hbm [shape: f32[2,16,16], index: 10, kind: output, shape index: {2}]
  %11 = xla_tuple %s8, %s9, %s10
  %s12 = sld [smem:[#allocation0]]
  $region109: #{tpu_custom_call.1} parent=0
    _
  %s14 = ssub.s32 1, %s12
  %s15 = scalar_select 0, %s14, %s12
  %16 = sst [smem:[#allocation4]] %s4
  $region1: #{tpu_custom_call.1} parent=0
    #allocation5 [shape = 'u8[512]{0}', space=smem, size = 0x200, scoped, tag = 'input window, operand 0, single buffered']
    #allocation6 [shape = 's32[2]{0}', space=sflag, size = 0x8, scoped, tag = 'scoped memory for tpu_custom_call.1']
    #allocation7 [shape = 's32[2]{0}', space=sflag, size = 0x8, scoped, tag = 'scoped memory for tpu_custom_call.1']
    #allocation8 [shape = 's32[2]{0}', space=sflag, size = 0x8, scoped, tag = 'scoped memory for tpu_custom_call.1']
    #allocation9 [shape = 'u8[512]{0}', space=smem, size = 0x200, scoped, tag = 'input window, operand 1, single buffered']
    #allocation10 [shape = 's32[1]{0}', space=sflag, size = 0x4, scoped, tag = 'scoped memory for tpu_custom_call.1']
    #allocation11 [shape = 'u8[512]{0}', space=smem, size = 0x200, scoped, tag = 'input window, operand 2, single buffered']
    #allocation12 [shape = 'u8[512]{0}', space=smem, size = 0x200, scoped, tag = 'input window, operand 3, single buffered']
    #allocation13 [shape = 's32[1]{0}', space=sflag, size = 0x4, scoped, tag = 'scoped memory for tpu_custom_call.1']
    #allocation14 [shape = 'u8[512]{0}', space=smem, size = 0x200, scoped, tag = 'input window, operand 5, single buffered']
    #allocation15 [shape = 'u8[16384]{0}', space=vmem, size = 0x4000, scoped, tag = 'input window, operand 6']
    #allocation16 [shape = 'u8[16384]{0}', space=vmem, size = 0x4000, scoped, tag = 'input window, operand 7']
    #allocation17 [shape = 's32[2]{0}', space=sflag, size = 0x8, scoped, tag = 'scoped memory for tpu_custom_call.1']
    #allocation18 [shape = 'u8[16384]{0}', space=vmem, size = 0x4000, scoped, tag = 'output window, operand 0']
    #allocation19 [shape = 'u8[16384]{0}', space=vmem, size = 0x4000, scoped, tag = 'output window, operand 1']
    #allocation20 [shape = 's32[2]{0}', space=sflag, size = 0x8, scoped, tag = 'scoped memory for tpu_custom_call.1']
    #allocation21 [shape = 'u8[16384]{0}', space=vmem, size = 0x4000, scoped, tag = 'output window, operand 2']
    %17 = vsyncpa [#allocation8], 0
    %18 = vsyncpa [#allocation10], 0
    %19 = vsyncpa [#allocation13], 0
    %20 = vsyncpa [#allocation6], 0
    %s21 = scalar_lea.sflag [#allocation6], 1
    %22 = vsyncpa %s21, 0
    %23 = vsyncpa [#allocation17], 0
    %s24 = scalar_lea.sflag [#allocation17], 1
    %25 = vsyncpa %s24, 0
    %26 = vsyncpa [#allocation7], 0
    %s27 = scalar_lea.sflag [#allocation7], 1
    %28 = vsyncpa %s27, 0
    %29 = vsyncpa [#allocation20], 0
    %s30 = scalar_lea.sflag [#allocation20], 1
    %31 = vsyncpa %s30, 0
    loop: start=0, step=1, limit=4
    $region2: #{tpu_custom_call.1} parent=1 // loop_pre_header
      _
    $region3: #{tpu_custom_call.1} parent=1 // loop_header
      %s33 = sphi 0, %s37
      %p34 = scmp.ge.s32.totalorder %s33, 4
      %s41 = sphi 0, %s41
      %s43 = sphi 0, %s41
      %s44 = sphi 0, %s43
      %s58 = sphi 0, %s44
      %s62 = sphi 0, %s62
      %s64 = sphi 0, %s62
      %s65 = sphi 0, %s64
      %s79 = sphi 0, %s65
      %s83 = sphi 0, %s83
      %s85 = sphi 0, %s83
      %s86 = sphi 0, %s85
      %s100 = sphi 0, %s86
      %s104 = sphi 0, %s104
      %s106 = sphi 0, %s104
      %s107 = sphi 0, %s106
      %s121 = sphi 0, %s107
      %s125 = sphi 0, %s125
      %s127 = sphi 0, %s125
      %s128 = sphi 0, %s127
      %s142 = sphi 0, %s128
      %s146 = sphi 0, %s146
      %s148 = sphi 0, %s146
      %s149 = sphi 0, %s148
      %s163 = sphi 0, %s149
      %s169 = sphi 0, %s171
      %s172 = sphi 0, %s169
      %s173 = sphi 0, %s172
      %s189 = sphi 0, %s173
      %s195 = sphi 0, %s197
      %s198 = sphi 0, %s195
      %s199 = sphi 0, %s198
      %s215 = sphi 0, %s199
      %s221 = sphi 0, %s223
      %s224 = sphi 0, %s221
      %s225 = sphi 0, %s224
      %s241 = sphi 0, %s225
      %s247 = sphi 0, %s249
      %s250 = sphi 0, %s247
      %s251 = sphi 0, %s250
      %s267 = sphi 0, %s251
      %s273 = sphi 0, %s275
      %s276 = sphi 0, %s273
      %s277 = sphi 0, %s276
      %s293 = sphi 0, %s277
    $region4: #{tpu_custom_call.1} parent=1 // loop_header_branch
      %36 = sbr.rel (%p34) target = $region8
    $region5: #{tpu_custom_call.1} parent=1 // loop_body
      %s38 = ssub.s32 %s33, 1
      %s39 = ssub.s32 %s33, 2
      %s40 = sadd.s32 %s33, 1
      %s42 = sadd.s32 %s41, 1
      %p45 = scmp.eq.s32.totalorder %s33, 1
      %p46 = scmp.ne.s32.totalorder %s41, %s43
      %p47 = scmp.eq.s32.totalorder %s33, 0
      %p48 = por %p46, %p47
      %p49 = scmp.ne.s32.totalorder %s41, %s43
      %p50 = scmp.eq.s32.totalorder %s38, 1
      %p51 = por %p49, %p50
      %p52 = scmp.ne.s32.totalorder %s43, %s44
      %p53 = scmp.eq.s32.totalorder %s38, 0
      %p54 = por %p52, %p53
      %p55 = scmp.ne.s32.totalorder %s43, %s44
      %p56 = scmp.eq.s32.totalorder %s39, 1
      %p57 = por %p55, %p56
      %p59 = scmp.ne.s32.totalorder %s44, %s58
      %p60 = scmp.eq.s32.totalorder %s39, 0
      %p61 = por %p59, %p60
      %s63 = sadd.s32 %s62, 1
      %p66 = scmp.eq.s32.totalorder %s33, 1
      %p67 = scmp.ne.s32.totalorder %s62, %s64
      %p68 = scmp.eq.s32.totalorder %s33, 0
      %p69 = por %p67, %p68
      %p70 = scmp.ne.s32.totalorder %s62, %s64
      %p71 = scmp.eq.s32.totalorder %s38, 1
      %p72 = por %p70, %p71
      %p73 = scmp.ne.s32.totalorder %s64, %s65
      %p74 = scmp.eq.s32.totalorder %s38, 0
      %p75 = por %p73, %p74
      %p76 = scmp.ne.s32.totalorder %s64, %s65
      %p77 = scmp.eq.s32.totalorder %s39, 1
      %p78 = por %p76, %p77
      %p80 = scmp.ne.s32.totalorder %s65, %s79
      %p81 = scmp.eq.s32.totalorder %s39, 0
      %p82 = por %p80, %p81
      %s84 = sadd.s32 %s83, 1
      %p87 = scmp.eq.s32.totalorder %s33, 1
      %p88 = scmp.ne.s32.totalorder %s83, %s85
      %p89 = scmp.eq.s32.totalorder %s33, 0
      %p90 = por %p88, %p89
      %p91 = scmp.ne.s32.totalorder %s83, %s85
      %p92 = scmp.eq.s32.totalorder %s38, 1
      %p93 = por %p91, %p92
      %p94 = scmp.ne.s32.totalorder %s85, %s86
      %p95 = scmp.eq.s32.totalorder %s38, 0
      %p96 = por %p94, %p95
      %p97 = scmp.ne.s32.totalorder %s85, %s86
      %p98 = scmp.eq.s32.totalorder %s39, 1
      %p99 = por %p97, %p98
      %p101 = scmp.ne.s32.totalorder %s86, %s100
      %p102 = scmp.eq.s32.totalorder %s39, 0
      %p103 = por %p101, %p102
      %s105 = sadd.s32 %s104, 1
      %p108 = scmp.eq.s32.totalorder %s33, 1
      %p109 = scmp.ne.s32.totalorder %s104, %s106
      %p110 = scmp.eq.s32.totalorder %s33, 0
      %p111 = por %p109, %p110
      %p112 = scmp.ne.s32.totalorder %s104, %s106
      %p113 = scmp.eq.s32.totalorder %s38, 1
      %p114 = por %p112, %p113
      %p115 = scmp.ne.s32.totalorder %s106, %s107
      %p116 = scmp.eq.s32.totalorder %s38, 0
      %p117 = por %p115, %p116
      %p118 = scmp.ne.s32.totalorder %s106, %s107
      %p119 = scmp.eq.s32.totalorder %s39, 1
      %p120 = por %p118, %p119
      %p122 = scmp.ne.s32.totalorder %s107, %s121
      %p123 = scmp.eq.s32.totalorder %s39, 0
      %p124 = por %p122, %p123
      %s126 = sadd.s32 %s125, 1
      %p129 = scmp.eq.s32.totalorder %s33, 1
      %p130 = scmp.ne.s32.totalorder %s125, %s127
      %p131 = scmp.eq.s32.totalorder %s33, 0
      %p132 = por %p130, %p131
      %p133 = scmp.ne.s32.totalorder %s125, %s127
      %p134 = scmp.eq.s32.totalorder %s38, 1
      %p135 = por %p133, %p134
      %p136 = scmp.ne.s32.totalorder %s127, %s128
      %p137 = scmp.eq.s32.totalorder %s38, 0
      %p138 = por %p136, %p137
      %p139 = scmp.ne.s32.totalorder %s127, %s128
      %p140 = scmp.eq.s32.totalorder %s39, 1
      %p141 = por %p139, %p140
      %p143 = scmp.ne.s32.totalorder %s128, %s142
      %p144 = scmp.eq.s32.totalorder %s39, 0
      %p145 = por %p143, %p144
      %s147 = sadd.s32 %s146, 1
      %p150 = scmp.eq.s32.totalorder %s33, 1
      %p151 = scmp.ne.s32.totalorder %s146, %s148
      %p152 = scmp.eq.s32.totalorder %s33, 0
      %p153 = por %p151, %p152
      %p154 = scmp.ne.s32.totalorder %s146, %s148
      %p155 = scmp.eq.s32.totalorder %s38, 1
      %p156 = por %p154, %p155
      %p157 = scmp.ne.s32.totalorder %s148, %s149
      %p158 = scmp.eq.s32.totalorder %s38, 0
      %p159 = por %p157, %p158
      %p160 = scmp.ne.s32.totalorder %s148, %s149
      %p161 = scmp.eq.s32.totalorder %s39, 1
      %p162 = por %p160, %p161
      %p164 = scmp.ne.s32.totalorder %s149, %s163
      %p165 = scmp.eq.s32.totalorder %s39, 0
      %p166 = por %p164, %p165
      %s167 = ssub.s32 %s33, %s40
      %p168 = scmp.eq.s32.totalorder %s167, 0
      %s170 = sadd.s32 %s169, 1
      %s171 = scalar_select %p168, %s169, %s170
      %p174 = pneg %p168
      %p175 = scmp.eq.s32.totalorder %s33, 1
      %p176 = por %p174, %p175
      %p177 = scmp.ne.s32.totalorder %s169, %s172
      %p178 = scmp.eq.s32.totalorder %s33, 0
      %p179 = por %p177, %p178
      %p180 = scmp.ne.s32.totalorder %s169, %s172
      %p181 = scmp.eq.s32.totalorder %s38, 1
      %p182 = por %p180, %p181
      %p183 = scmp.ne.s32.totalorder %s172, %s173
      %p184 = scmp.eq.s32.totalorder %s38, 0
      %p185 = por %p183, %p184
      %p186 = scmp.ne.s32.totalorder %s172, %s173
      %p187 = scmp.eq.s32.totalorder %s39, 1
      %p188 = por %p186, %p187
      %p190 = scmp.ne.s32.totalorder %s173, %s189
      %p191 = scmp.eq.s32.totalorder %s39, 0
      %p192 = por %p190, %p191
      %s193 = ssub.s32 %s33, %s40
      %p194 = scmp.eq.s32.totalorder %s193, 0
      %s196 = sadd.s32 %s195, 1
      %s197 = scalar_select %p194, %s195, %s196
      %p200 = pneg %p194
      %p201 = scmp.eq.s32.totalorder %s33, 1
      %p202 = por %p200, %p201
      %p203 = scmp.ne.s32.totalorder %s195, %s198
      %p204 = scmp.eq.s32.totalorder %s33, 0
      %p205 = por %p203, %p204
      %p206 = scmp.ne.s32.totalorder %s195, %s198
      %p207 = scmp.eq.s32.totalorder %s38, 1
      %p208 = por %p206, %p207
      %p209 = scmp.ne.s32.totalorder %s198, %s199
      %p210 = scmp.eq.s32.totalorder %s38, 0
      %p211 = por %p209, %p210
      %p212 = scmp.ne.s32.totalorder %s198, %s199
      %p213 = scmp.eq.s32.totalorder %s39, 1
      %p214 = por %p212, %p213
      %p216 = scmp.ne.s32.totalorder %s199, %s215
      %p217 = scmp.eq.s32.totalorder %s39, 0
      %p218 = por %p216, %p217
      %s219 = ssub.s32 %s33, %s40
      %p220 = scmp.eq.s32.totalorder %s219, 0
      %s222 = sadd.s32 %s221, 1
      %s223 = scalar_select %p220, %s221, %s222
      %p226 = pneg %p220
      %p227 = scmp.eq.s32.totalorder %s33, 1
      %p228 = por %p226, %p227
      %p229 = scmp.ne.s32.totalorder %s221, %s224
      %p230 = scmp.eq.s32.totalorder %s33, 0
      %p231 = por %p229, %p230
      %p232 = scmp.ne.s32.totalorder %s221, %s224
      %p233 = scmp.eq.s32.totalorder %s38, 1
      %p234 = por %p232, %p233
      %p235 = scmp.ne.s32.totalorder %s224, %s225
      %p236 = scmp.eq.s32.totalorder %s38, 0
      %p237 = por %p235, %p236
      %p238 = scmp.ne.s32.totalorder %s224, %s225
      %p239 = scmp.eq.s32.totalorder %s39, 1
      %p240 = por %p238, %p239
      %p242 = scmp.ne.s32.totalorder %s225, %s241
      %p243 = scmp.eq.s32.totalorder %s39, 0
      %p244 = por %p242, %p243
      %s245 = ssub.s32 %s33, %s40
      %p246 = scmp.eq.s32.totalorder %s245, 0
      %s248 = sadd.s32 %s247, 1
      %s249 = scalar_select %p246, %s247, %s248
      %p252 = pneg %p246
      %p253 = scmp.eq.s32.totalorder %s33, 1
      %p254 = por %p252, %p253
      %p255 = scmp.ne.s32.totalorder %s247, %s250
      %p256 = scmp.eq.s32.totalorder %s33, 0
      %p257 = por %p255, %p256
      %p258 = scmp.ne.s32.totalorder %s247, %s250
      %p259 = scmp.eq.s32.totalorder %s38, 1
      %p260 = por %p258, %p259
      %p261 = scmp.ne.s32.totalorder %s250, %s251
      %p262 = scmp.eq.s32.totalorder %s38, 0
      %p263 = por %p261, %p262
      %p264 = scmp.ne.s32.totalorder %s250, %s251
      %p265 = scmp.eq.s32.totalorder %s39, 1
      %p266 = por %p264, %p265
      %p268 = scmp.ne.s32.totalorder %s251, %s267
      %p269 = scmp.eq.s32.totalorder %s39, 0
      %p270 = por %p268, %p269
      %s271 = ssub.s32 %s33, %s40
      %p272 = scmp.eq.s32.totalorder %s271, 0
      %s274 = sadd.s32 %s273, 1
      %s275 = scalar_select %p272, %s273, %s274
      %p278 = pneg %p272
      %p279 = scmp.eq.s32.totalorder %s33, 1
      %p280 = por %p278, %p279
      %p281 = scmp.ne.s32.totalorder %s273, %s276
      %p282 = scmp.eq.s32.totalorder %s33, 0
      %p283 = por %p281, %p282
      %p284 = scmp.ne.s32.totalorder %s273, %s276
      %p285 = scmp.eq.s32.totalorder %s38, 1
      %p286 = por %p284, %p285
      %p287 = scmp.ne.s32.totalorder %s276, %s277
      %p288 = scmp.eq.s32.totalorder %s38, 0
      %p289 = por %p287, %p288
      %p290 = scmp.ne.s32.totalorder %s276, %s277
      %p291 = scmp.eq.s32.totalorder %s39, 1
      %p292 = por %p290, %p291
      %p294 = scmp.ne.s32.totalorder %s277, %s293
      %p295 = scmp.eq.s32.totalorder %s39, 0
      %p296 = por %p294, %p295
      %p297 = scmp.le.s32.totalorder 1, %s33
      %p298 = scmp.lt.s32.totalorder %s33, 3
      %p299 = pnand %p297, %p298
      %p300 = pneg %p299
      // Predicated region
      $region9: #{tpu_custom_call.1} parent=5 // pred_check
        _
      $region10: #{tpu_custom_call.1} parent=5 // pred_check_branch
        %302 = sbr.rel (%p299) target = $region12
      $region11: #{tpu_custom_call.1} parent=5 // pred_region
        %s303 = ssub.s32 %s33, 1
        // Predicated region
        $region13: #{tpu_custom_call.1} parent=11 // pred_check
          %p304 = pneg %p54
        $region14: #{tpu_custom_call.1} parent=11 // pred_check_branch
          %306 = sbr.rel (%p304) target = $region16
        $region15: #{tpu_custom_call.1} parent=11 // pred_region
          %s308 = ssub.s32 16, 16
          %309 = vsyncadd [#allocation8], %s308
          %s311 = sshll.u32 %s0, 4
          %s312 = int_to_ptr.vmem [resolvable:$true] %s311
          %314 = dma.vmem_to_smem %s312, 16, [#allocation5], [#allocation8]
        $region16: #{tpu_custom_call.1} parent=11 // pred_fallthru
          _
        // Predicated region
        $region17: #{tpu_custom_call.1} parent=11 // pred_check
          %p315 = pneg %p75
        $region18: #{tpu_custom_call.1} parent=11 // pred_check_branch
          %317 = sbr.rel (%p315) target = $region20
        $region19: #{tpu_custom_call.1} parent=11 // pred_region
          %s319 = ssub.s32 16, 16
          %320 = vsyncadd [#allocation10], %s319
          %s322 = sshll.u32 %s1, 4
          %s323 = int_to_ptr.vmem [resolvable:$true] %s322
          %325 = dma.vmem_to_smem %s323, 16, [#allocation9], [#allocation10]
        $region20: #{tpu_custom_call.1} parent=11 // pred_fallthru
          _
        // Predicated region
        $region21: #{tpu_custom_call.1} parent=11 // pred_check
          %p326 = pneg %p96
        $region22: #{tpu_custom_call.1} parent=11 // pred_check_branch
          %328 = sbr.rel (%p326) target = $region24
        $region23: #{tpu_custom_call.1} parent=11 // pred_region
          %s330 = ssub.s32 16, 16
          %331 = vsyncadd [#allocation10], %s330
          %s333 = sshll.u32 %s2, 4
          %s334 = int_to_ptr.vmem [resolvable:$true] %s333
          %336 = dma.vmem_to_smem %s334, 16, [#allocation11], [#allocation10]
        $region24: #{tpu_custom_call.1} parent=11 // pred_fallthru
          _
        // Predicated region
        $region25: #{tpu_custom_call.1} parent=11 // pred_check
          %p337 = pneg %p117
        $region26: #{tpu_custom_call.1} parent=11 // pred_check_branch
          %339 = sbr.rel (%p337) target = $region28
        $region27: #{tpu_custom_call.1} parent=11 // pred_region
          %s341 = ssub.s32 16, 16
          %342 = vsyncadd [#allocation13], %s341
          %s344 = sshll.u32 %s3, 4
          %s345 = int_to_ptr.vmem [resolvable:$true] %s344
          %347 = dma.vmem_to_smem %s345, 16, [#allocation12], [#allocation13]
        $region28: #{tpu_custom_call.1} parent=11 // pred_fallthru
          _
        // Predicated region
        $region29: #{tpu_custom_call.1} parent=11 // pred_check
          %p348 = pneg %p138
        $region30: #{tpu_custom_call.1} parent=11 // pred_check_branch
          %350 = sbr.rel (%p348) target = $region32
        $region31: #{tpu_custom_call.1} parent=11 // pred_region
          _
        $region32: #{tpu_custom_call.1} parent=11 // pred_fallthru
          _
        // Predicated region
        $region33: #{tpu_custom_call.1} parent=11 // pred_check
          %p351 = pneg %p159
        $region34: #{tpu_custom_call.1} parent=11 // pred_check_branch
          %353 = sbr.rel (%p351) target = $region36
        $region35: #{tpu_custom_call.1} parent=11 // pred_region
          %s355 = ssub.s32 16, 16
          %356 = vsyncadd [#allocation13], %s355
          %s358 = sshll.u32 %s5, 4
          %s359 = int_to_ptr.vmem [resolvable:$true] %s358
          %361 = dma.vmem_to_smem %s359, 16, [#allocation14], [#allocation13]
        $region36: #{tpu_custom_call.1} parent=11 // pred_fallthru
          _
      $region12: #{tpu_custom_call.1} parent=5 // pred_fallthru
        _
      %p362 = scmp.lt.s32.totalorder %s33, 2
      // Predicated region
      $region37: #{tpu_custom_call.1} parent=5 // pred_check
        %p363 = pneg %p362
      $region38: #{tpu_custom_call.1} parent=5 // pred_check_branch
        %365 = sbr.rel (%p363) target = $region40
      $region39: #{tpu_custom_call.1} parent=5 // pred_region
        // Predicated region
        $region41: #{tpu_custom_call.1} parent=39 // pred_check
          %p366 = pneg %p179
        $region42: #{tpu_custom_call.1} parent=39 // pred_check_branch
          %368 = sbr.rel (%p366) target = $region44
        $region43: #{tpu_custom_call.1} parent=39 // pred_region
          %s369 = sand.u32 %s169, 1
          %s370 = scalar_lea.sflag [#allocation6], %s369
          %s371 = sand.u32 %s169, 1
          %s372 = smul.addr %s371, 16
          %s373 = scalar_lea.vmem [#allocation15], %s372
          %s375 = ssub.s32 256, 256
          %376 = vsyncadd %s370, %s375
          %s377 = smul.addr %s33, 2
          %s378 = smul.addr %s377, 128
          %s379 = scalar_lea.hbm %s6, %s378
          %s380 = sshll.u32 %s373, 4
          %s381 = int_to_ptr.vmem [resolvable:$true] %s380
          %386 = dma.hbm_to_vmem [thread:$0]  %s379, 256, %s381, %s370, 128, 128, 8
        $region44: #{tpu_custom_call.1} parent=39 // pred_fallthru
          _
        // Predicated region
        $region45: #{tpu_custom_call.1} parent=39 // pred_check
          %p387 = pneg %p205
        $region46: #{tpu_custom_call.1} parent=39 // pred_check_branch
          %389 = sbr.rel (%p387) target = $region48
        $region47: #{tpu_custom_call.1} parent=39 // pred_region
          %s390 = sand.u32 %s195, 1
          %s391 = scalar_lea.sflag [#allocation17], %s390
          %s392 = sand.u32 %s195, 1
          %s393 = smul.addr %s392, 16
          %s394 = scalar_lea.vmem [#allocation16], %s393
          %s396 = ssub.s32 256, 256
          %397 = vsyncadd %s391, %s396
          %s398 = smul.addr %s33, 2
          %s399 = smul.addr %s398, 128
          %s400 = scalar_lea.hbm %s7, %s399
          %s401 = sshll.u32 %s394, 4
          %s402 = int_to_ptr.vmem [resolvable:$true] %s401
          %407 = dma.hbm_to_vmem [thread:$0]  %s400, 256, %s402, %s391, 128, 128, 8
        $region48: #{tpu_custom_call.1} parent=39 // pred_fallthru
          _
      $region40: #{tpu_custom_call.1} parent=5 // pred_fallthru
        _
      %p408 = scmp.le.s32.totalorder 1, %s33
      %p409 = scmp.lt.s32.totalorder %s33, 3
      %p410 = pnand %p408, %p409
      %p411 = pneg %p410
      // Predicated region
      $region49: #{tpu_custom_call.1} parent=5 // pred_check
        _
      $region50: #{tpu_custom_call.1} parent=5 // pred_check_branch
        %413 = sbr.rel (%p410) target = $region52
      $region51: #{tpu_custom_call.1} parent=5 // pred_region
        %s414 = ssub.s32 %s33, 1
        // Predicated region
        $region53: #{tpu_custom_call.1} parent=51 // pred_check
          %p415 = pneg %p54
        $region54: #{tpu_custom_call.1} parent=51 // pred_check_branch
          %417 = sbr.rel (%p415) target = $region56
        $region55: #{tpu_custom_call.1} parent=51 // pred_region
          %418 = dma.done [#allocation8], 16
        $region56: #{tpu_custom_call.1} parent=51 // pred_fallthru
          _
        // Predicated region
        $region57: #{tpu_custom_call.1} parent=51 // pred_check
          %p419 = pneg %p75
        $region58: #{tpu_custom_call.1} parent=51 // pred_check_branch
          %421 = sbr.rel (%p419) target = $region60
        $region59: #{tpu_custom_call.1} parent=51 // pred_region
          %422 = dma.done [#allocation10], 16
        $region60: #{tpu_custom_call.1} parent=51 // pred_fallthru
          _
        // Predicated region
        $region61: #{tpu_custom_call.1} parent=51 // pred_check
          %p423 = pneg %p96
        $region62: #{tpu_custom_call.1} parent=51 // pred_check_branch
          %425 = sbr.rel (%p423) target = $region64
        $region63: #{tpu_custom_call.1} parent=51 // pred_region
          %426 = dma.done [#allocation10], 16
        $region64: #{tpu_custom_call.1} parent=51 // pred_fallthru
          _
        // Predicated region
        $region65: #{tpu_custom_call.1} parent=51 // pred_check
          %p427 = pneg %p117
        $region66: #{tpu_custom_call.1} parent=51 // pred_check_branch
          %429 = sbr.rel (%p427) target = $region68
        $region67: #{tpu_custom_call.1} parent=51 // pred_region
          %430 = dma.done [#allocation13], 16
        $region68: #{tpu_custom_call.1} parent=51 // pred_fallthru
          _
        // Predicated region
        $region69: #{tpu_custom_call.1} parent=51 // pred_check
          %p431 = pneg %p159
        $region70: #{tpu_custom_call.1} parent=51 // pred_check_branch
          %433 = sbr.rel (%p431) target = $region72
        $region71: #{tpu_custom_call.1} parent=51 // pred_region
          %434 = dma.done [#allocation13], 16
        $region72: #{tpu_custom_call.1} parent=51 // pred_fallthru
          _
        %s435 = sand.u32 %s172, 1
        %s436 = scalar_lea.sflag [#allocation6], %s435
        %s437 = sand.u32 %s172, 1
        %s438 = smul.addr %s437, 16
        %s439 = scalar_lea.vmem [#allocation15], %s438
        // Predicated region
        $region73: #{tpu_custom_call.1} parent=51 // pred_check
          %p440 = pneg %p185
        $region74: #{tpu_custom_call.1} parent=51 // pred_check_branch
          %442 = sbr.rel (%p440) target = $region76
        $region75: #{tpu_custom_call.1} parent=51 // pred_region
          %443 = dma.done %s436, 256
        $region76: #{tpu_custom_call.1} parent=51 // pred_fallthru
          _
        %s444 = sand.u32 %s198, 1
        %s445 = scalar_lea.sflag [#allocation17], %s444
        %s446 = sand.u32 %s198, 1
        %s447 = smul.addr %s446, 16
        %s448 = scalar_lea.vmem [#allocation16], %s447
        // Predicated region
        $region77: #{tpu_custom_call.1} parent=51 // pred_check
          %p449 = pneg %p211
        $region78: #{tpu_custom_call.1} parent=51 // pred_check_branch
          %451 = sbr.rel (%p449) target = $region80
        $region79: #{tpu_custom_call.1} parent=51 // pred_region
          %452 = dma.done %s445, 256
        $region80: #{tpu_custom_call.1} parent=51 // pred_fallthru
          _
        %453 = sfence
        %p454 = pneg %p54
        %p455 = pneg %p51
        %p456 = pneg %p75
        %p457 = pneg %p72
        %p458 = pneg %p96
        %p459 = pneg %p93
        %p460 = pneg %p117
        %p461 = pneg %p114
        %p462 = pneg %p138
        %p463 = pneg %p135
        %p464 = pneg %p159
        %p465 = pneg %p156
        %s466 = sand.u32 %s172, 1
        %s467 = scalar_lea.sflag [#allocation6], %s466
        %s468 = sand.u32 %s172, 1
        %s469 = smul.addr %s468, 16
        %s470 = scalar_lea.vmem [#allocation15], %s469
        %p471 = pneg %p185
        %p472 = pneg %p182
        %s473 = sand.u32 %s198, 1
        %s474 = scalar_lea.sflag [#allocation17], %s473
        %s475 = sand.u32 %s198, 1
        %s476 = smul.addr %s475, 16
        %s477 = scalar_lea.vmem [#allocation16], %s476
        %p478 = pneg %p211
        %p479 = pneg %p208
        %p480 = pneg %p237
        %p481 = pneg %p234
        %s482 = sand.u32 %s224, 1
        %s483 = scalar_lea.sflag [#allocation7], %s482
        %s484 = sand.u32 %s224, 1
        %s485 = smul.addr %s484, 16
        %s486 = scalar_lea.vmem [#allocation18], %s485
        %p487 = pneg %p263
        %p488 = pneg %p260
        %s489 = sand.u32 %s38, 1
        %s490 = scalar_lea.sflag [#allocation20], %s489
        %s491 = sand.u32 %s250, 1
        %s492 = smul.addr %s491, 16
        %s493 = scalar_lea.vmem [#allocation19], %s492
        %p494 = pneg %p289
        %p495 = pneg %p286
        %s496 = sand.u32 %s38, 1
        %s497 = scalar_lea.sflag [#allocation20], %s496
        %s498 = sand.u32 %s276, 1
        %s499 = smul.addr %s498, 16
        %s500 = scalar_lea.vmem [#allocation21], %s499
        %vm501 = vcmask 146432
        %502 = vst.msk [vmem:[#allocation2] sm:$0xff] %vm501, 0.0
        %503 = vst.msk [vmem:[#allocation2 + $0x8] sm:$0xff] %vm501, 0.0
        %vm504 = vcmask 140288
        %505 = vst.msk [vmem:[#allocation2 + $0x10] sm:$0x3] %vm504, 0.0
        %506 = vst.msk [vmem:[#allocation3] sm:$0xff] %vm501, 0.0
        %507 = vst.msk [vmem:[#allocation3 + $0x8] sm:$0xff] %vm501, 0.0
        %508 = vst.msk [vmem:[#allocation3 + $0x10] sm:$0x3] %vm504, 0.0
        %509 = vst.msk [vmem:[#allocation3 + $0x18] sm:$0xff] %vm501, 0.0
        %510 = vst.msk [vmem:[#allocation3 + $0x20] sm:$0xff] %vm501, 0.0
        %511 = vst.msk [vmem:[#allocation3 + $0x28] sm:$0x3] %vm504, 0.0
        %512 = vst.msk [vmem:[#allocation3 + $0x30] sm:$0xff] %vm501, 0.0
        %513 = vst.msk [vmem:[#allocation3 + $0x38] sm:$0xff] %vm501, 0.0
        %514 = vst.msk [vmem:[#allocation3 + $0x40] sm:$0x3] %vm504, 0.0
        %515 = vst.msk [vmem:[#allocation3 + $0x48] sm:$0xff] %vm501, 0.0
        %516 = vst.msk [vmem:[#allocation3 + $0x50] sm:$0xff] %vm501, 0.0
        %517 = vst.msk [vmem:[#allocation3 + $0x58] sm:$0x3] %vm504, 0.0
        %v518 = vld [vmem:[%s439] sm:$0xff]
        %v519 = vld [vmem:[%s439 + $0x8] sm:$0xff]
        %522 = vrot.lane.b32.xlu0 %v518, 1
        %v523 = vpop.permute.xlu0 %522
        %524 = vrot.lane.b32.xlu0 %v519, 1
        %v525 = vpop.permute.xlu0 %524
        %vm528 = vcmask 138248
        %529 = vst.msk [vmem:[#allocation2 + $0x1] sm:$0xff] %vm528, %v523
        %530 = vst.msk [vmem:[#allocation2 + $0x9] sm:$0xff] %vm528, %v525
        %v531 = vld [vmem:[#allocation2] sm:$0xff]
        %v532 = vld [vmem:[#allocation2 + $0x8] sm:$0xff]
        %v533 = vld [vmem:[#allocation2 + $0x1] sm:$0xff]
        %v534 = vld [vmem:[#allocation2 + $0x9] sm:$0xff]
        %v535 = vld [vmem:[#allocation2 + $0x2] sm:$0xff]
        %v536 = vld [vmem:[#allocation2 + $0xa] sm:$0xff]
        %s537 = sld [smem:[#allocation11]]
        %v538 = vstv %s537
        %s539 = sld [smem:[#allocation9]]
        %v540 = vstv %s539
        %v541 = vmul.f32 %v540, %v531
        %v542 = vmul.f32 %v540, %v532
        %v543 = vadd.f32 %v538, %v541
        %v544 = vadd.f32 %v538, %v542
        %s545 = sld [smem:[#allocation9 + $0x1]]
        %v546 = vstv %s545
        %v547 = vmul.f32 %v546, %v531
        %v548 = vmul.f32 %v546, %v532
        %551 = vrot.lane.b32.xlu0 %v547, 127
        %v552 = vpop.permute.xlu0 %551
        %553 = vrot.lane.b32.xlu0 %v548, 127
        %v554 = vpop.permute.xlu0 %553
        %v557 = vadd.f32 %v543, %v552
        %v558 = vadd.f32 %v544, %v554
        %s559 = sld [smem:[#allocation9 + $0x2]]
        %v560 = vstv %s559
        %v561 = vmul.f32 %v560, %v531
        %v562 = vmul.f32 %v560, %v532
        %565 = vrot.lane.b32.xlu0 %v561, 126
        %v566 = vpop.permute.xlu0 %565
        %567 = vrot.lane.b32.xlu0 %v562, 126
        %v568 = vpop.permute.xlu0 %567
        %v571 = vadd.f32 %v557, %v566
        %v572 = vadd.f32 %v558, %v568
        %s573 = sld [smem:[#allocation9 + $0x3]]
        %v574 = vstv %s573
        %v575 = vmul.f32 %v574, %v533
        %v576 = vmul.f32 %v574, %v534
        %v577 = vadd.f32 %v571, %v575
        %v578 = vadd.f32 %v572, %v576
        %s579 = sld [smem:[#allocation9 + $0x4]]
        %v580 = vstv %s579
        %v581 = vmul.f32 %v580, %v533
        %v582 = vmul.f32 %v580, %v534
        %585 = vrot.lane.b32.xlu0 %v581, 127
        %v586 = vpop.permute.xlu0 %585
        %587 = vrot.lane.b32.xlu0 %v582, 127
        %v588 = vpop.permute.xlu0 %587
        %v591 = vadd.f32 %v577, %v586
        %v592 = vadd.f32 %v578, %v588
        %s593 = sld [smem:[#allocation9 + $0x5]]
        %v594 = vstv %s593
        %v595 = vmul.f32 %v594, %v533
        %v596 = vmul.f32 %v594, %v534
        %599 = vrot.lane.b32.xlu0 %v595, 126
        %v600 = vpop.permute.xlu0 %599
        %601 = vrot.lane.b32.xlu0 %v596, 126
        %v602 = vpop.permute.xlu0 %601
        %v605 = vadd.f32 %v591, %v600
        %v606 = vadd.f32 %v592, %v602
        %s607 = sld [smem:[#allocation9 + $0x6]]
        %v608 = vstv %s607
        %v609 = vmul.f32 %v608, %v535
        %v610 = vmul.f32 %v608, %v536
        %v611 = vadd.f32 %v605, %v609
        %v612 = vadd.f32 %v606, %v610
        %s613 = sld [smem:[#allocation9 + $0x7]]
        %v614 = vstv %s613
        %v615 = vmul.f32 %v614, %v535
        %v616 = vmul.f32 %v614, %v536
        %619 = vrot.lane.b32.xlu0 %v615, 127
        %v620 = vpop.permute.xlu0 %619
        %621 = vrot.lane.b32.xlu0 %v616, 127
        %v622 = vpop.permute.xlu0 %621
        %v625 = vadd.f32 %v611, %v620
        %v626 = vadd.f32 %v612, %v622
        %s627 = sld [smem:[#allocation9 + $0x8]]
        %v628 = vstv %s627
        %v629 = vmul.f32 %v628, %v535
        %v630 = vmul.f32 %v628, %v536
        %633 = vrot.lane.b32.xlu0 %v629, 126
        %v634 = vpop.permute.xlu0 %633
        %635 = vrot.lane.b32.xlu0 %v630, 126
        %v636 = vpop.permute.xlu0 %635
        %v639 = vadd.f32 %v625, %v634
        %v640 = vadd.f32 %v626, %v636
        %v641 = vmax.f32 %v639, 0.0
        %v642 = vmax.f32 %v640, 0.0
        %645 = vrot.lane.b32.xlu0 %v641, 1
        %v646 = vpop.permute.xlu0 %645
        %647 = vrot.lane.b32.xlu0 %v642, 1
        %v648 = vpop.permute.xlu0 %647
        %651 = vst.msk [vmem:[#allocation3 + $0x1] sm:$0xff] %vm528, %v646
        %652 = vst.msk [vmem:[#allocation3 + $0x9] sm:$0xff] %vm528, %v648
        %s653 = sld [smem:[#allocation11 + $0x1]]
        %v654 = vstv %s653
        %s655 = sld [smem:[#allocation9 + $0x9]]
        %v656 = vstv %s655
        %v657 = vmul.f32 %v656, %v531
        %v658 = vmul.f32 %v656, %v532
        %v659 = vadd.f32 %v654, %v657
        %v660 = vadd.f32 %v654, %v658
        %s661 = sld [smem:[#allocation9 + $0xa]]
        %v662 = vstv %s661
        %v663 = vmul.f32 %v662, %v531
        %v664 = vmul.f32 %v662, %v532
        %667 = vrot.lane.b32.xlu0 %v663, 127
        %v668 = vpop.permute.xlu0 %667
        %669 = vrot.lane.b32.xlu0 %v664, 127
        %v670 = vpop.permute.xlu0 %669
        %v673 = vadd.f32 %v659, %v668
        %v674 = vadd.f32 %v660, %v670
        %s675 = sld [smem:[#allocation9 + $0xb]]
        %v676 = vstv %s675
        %v677 = vmul.f32 %v676, %v531
        %v678 = vmul.f32 %v676, %v532
        %681 = vrot.lane.b32.xlu0 %v677, 126
        %v682 = vpop.permute.xlu0 %681
        %683 = vrot.lane.b32.xlu0 %v678, 126
        %v684 = vpop.permute.xlu0 %683
        %v687 = vadd.f32 %v673, %v682
        %v688 = vadd.f32 %v674, %v684
        %s689 = sld [smem:[#allocation9 + $0xc]]
        %v690 = vstv %s689
        %v691 = vmul.f32 %v690, %v533
        %v692 = vmul.f32 %v690, %v534
        %v693 = vadd.f32 %v687, %v691
        %v694 = vadd.f32 %v688, %v692
        %s695 = sld [smem:[#allocation9 + $0xd]]
        %v696 = vstv %s695
        %v697 = vmul.f32 %v696, %v533
        %v698 = vmul.f32 %v696, %v534
        %701 = vrot.lane.b32.xlu0 %v697, 127
        %v702 = vpop.permute.xlu0 %701
        %703 = vrot.lane.b32.xlu0 %v698, 127
        %v704 = vpop.permute.xlu0 %703
        %v707 = vadd.f32 %v693, %v702
        %v708 = vadd.f32 %v694, %v704
        %s709 = sld [smem:[#allocation9 + $0xe]]
        %v710 = vstv %s709
        %v711 = vmul.f32 %v710, %v533
        %v712 = vmul.f32 %v710, %v534
        %715 = vrot.lane.b32.xlu0 %v711, 126
        %v716 = vpop.permute.xlu0 %715
        %717 = vrot.lane.b32.xlu0 %v712, 126
        %v718 = vpop.permute.xlu0 %717
        %v721 = vadd.f32 %v707, %v716
        %v722 = vadd.f32 %v708, %v718
        %s723 = sld [smem:[#allocation9 + $0xf]]
        %v724 = vstv %s723
        %v725 = vmul.f32 %v724, %v535
        %v726 = vmul.f32 %v724, %v536
        %v727 = vadd.f32 %v721, %v725
        %v728 = vadd.f32 %v722, %v726
        %s729 = sld [smem:[#allocation9 + $0x10]]
        %v730 = vstv %s729
        %v731 = vmul.f32 %v730, %v535
        %v732 = vmul.f32 %v730, %v536
        %735 = vrot.lane.b32.xlu0 %v731, 127
        %v736 = vpop.permute.xlu0 %735
        %737 = vrot.lane.b32.xlu0 %v732, 127
        %v738 = vpop.permute.xlu0 %737
        %v741 = vadd.f32 %v727, %v736
        %v742 = vadd.f32 %v728, %v738
        %s743 = sld [smem:[#allocation9 + $0x11]]
        %v744 = vstv %s743
        %v745 = vmul.f32 %v744, %v535
        %v746 = vmul.f32 %v744, %v536
        %749 = vrot.lane.b32.xlu0 %v745, 126
        %v750 = vpop.permute.xlu0 %749
        %751 = vrot.lane.b32.xlu0 %v746, 126
        %v752 = vpop.permute.xlu0 %751
        %v755 = vadd.f32 %v741, %v750
        %v756 = vadd.f32 %v742, %v752
        %v757 = vmax.f32 %v755, 0.0
        %v758 = vmax.f32 %v756, 0.0
        %761 = vrot.lane.b32.xlu0 %v757, 1
        %v762 = vpop.permute.xlu0 %761
        %763 = vrot.lane.b32.xlu0 %v758, 1
        %v764 = vpop.permute.xlu0 %763
        %s767 = scalar_lea.vmem [#allocation3], 24
        %768 = vst.msk [vmem:[%s767 + $0x1] sm:$0xff] %vm528, %v762
        %769 = vst.msk [vmem:[%s767 + $0x9] sm:$0xff] %vm528, %v764
        %s770 = sld [smem:[#allocation11 + $0x2]]
        %v771 = vstv %s770
        %s772 = sld [smem:[#allocation9 + $0x12]]
        %v773 = vstv %s772
        %v774 = vmul.f32 %v773, %v531
        %v775 = vmul.f32 %v773, %v532
        %v776 = vadd.f32 %v771, %v774
        %v777 = vadd.f32 %v771, %v775
        %s778 = sld [smem:[#allocation9 + $0x13]]
        %v779 = vstv %s778
        %v780 = vmul.f32 %v779, %v531
        %v781 = vmul.f32 %v779, %v532
        %784 = vrot.lane.b32.xlu0 %v780, 127
        %v785 = vpop.permute.xlu0 %784
        %786 = vrot.lane.b32.xlu0 %v781, 127
        %v787 = vpop.permute.xlu0 %786
        %v790 = vadd.f32 %v776, %v785
        %v791 = vadd.f32 %v777, %v787
        %s792 = sld [smem:[#allocation9 + $0x14]]
        %v793 = vstv %s792
        %v794 = vmul.f32 %v793, %v531
        %v795 = vmul.f32 %v793, %v532
        %798 = vrot.lane.b32.xlu0 %v794, 126
        %v799 = vpop.permute.xlu0 %798
        %800 = vrot.lane.b32.xlu0 %v795, 126
        %v801 = vpop.permute.xlu0 %800
        %v804 = vadd.f32 %v790, %v799
        %v805 = vadd.f32 %v791, %v801
        %s806 = sld [smem:[#allocation9 + $0x15]]
        %v807 = vstv %s806
        %v808 = vmul.f32 %v807, %v533
        %v809 = vmul.f32 %v807, %v534
        %v810 = vadd.f32 %v804, %v808
        %v811 = vadd.f32 %v805, %v809
        %s812 = sld [smem:[#allocation9 + $0x16]]
        %v813 = vstv %s812
        %v814 = vmul.f32 %v813, %v533
        %v815 = vmul.f32 %v813, %v534
        %818 = vrot.lane.b32.xlu0 %v814, 127
        %v819 = vpop.permute.xlu0 %818
        %820 = vrot.lane.b32.xlu0 %v815, 127
        %v821 = vpop.permute.xlu0 %820
        %v824 = vadd.f32 %v810, %v819
        %v825 = vadd.f32 %v811, %v821
        %s826 = sld [smem:[#allocation9 + $0x17]]
        %v827 = vstv %s826
        %v828 = vmul.f32 %v827, %v533
        %v829 = vmul.f32 %v827, %v534
        %832 = vrot.lane.b32.xlu0 %v828, 126
        %v833 = vpop.permute.xlu0 %832
        %834 = vrot.lane.b32.xlu0 %v829, 126
        %v835 = vpop.permute.xlu0 %834
        %v838 = vadd.f32 %v824, %v833
        %v839 = vadd.f32 %v825, %v835
        %s840 = sld [smem:[#allocation9 + $0x18]]
        %v841 = vstv %s840
        %v842 = vmul.f32 %v841, %v535
        %v843 = vmul.f32 %v841, %v536
        %v844 = vadd.f32 %v838, %v842
        %v845 = vadd.f32 %v839, %v843
        %s846 = sld [smem:[#allocation9 + $0x19]]
        %v847 = vstv %s846
        %v848 = vmul.f32 %v847, %v535
        %v849 = vmul.f32 %v847, %v536
        %852 = vrot.lane.b32.xlu0 %v848, 127
        %v853 = vpop.permute.xlu0 %852
        %854 = vrot.lane.b32.xlu0 %v849, 127
        %v855 = vpop.permute.xlu0 %854
        %v858 = vadd.f32 %v844, %v853
        %v859 = vadd.f32 %v845, %v855
        %s860 = sld [smem:[#allocation9 + $0x1a]]
        %v861 = vstv %s860
        %v862 = vmul.f32 %v861, %v535
        %v863 = vmul.f32 %v861, %v536
        %866 = vrot.lane.b32.xlu0 %v862, 126
        %v867 = vpop.permute.xlu0 %866
        %868 = vrot.lane.b32.xlu0 %v863, 126
        %v869 = vpop.permute.xlu0 %868
        %v872 = vadd.f32 %v858, %v867
        %v873 = vadd.f32 %v859, %v869
        %v874 = vmax.f32 %v872, 0.0
        %v875 = vmax.f32 %v873, 0.0
        %878 = vrot.lane.b32.xlu0 %v874, 1
        %v879 = vpop.permute.xlu0 %878
        %880 = vrot.lane.b32.xlu0 %v875, 1
        %v881 = vpop.permute.xlu0 %880
        %s884 = scalar_lea.vmem [#allocation3], 48
        %885 = vst.msk [vmem:[%s884 + $0x1] sm:$0xff] %vm528, %v879
        %886 = vst.msk [vmem:[%s884 + $0x9] sm:$0xff] %vm528, %v881
        %s887 = sld [smem:[#allocation11 + $0x3]]
        %v888 = vstv %s887
        %s889 = sld [smem:[#allocation9 + $0x1b]]
        %v890 = vstv %s889
        %v891 = vmul.f32 %v890, %v531
        %v892 = vmul.f32 %v890, %v532
        %v893 = vadd.f32 %v888, %v891
        %v894 = vadd.f32 %v888, %v892
        %s895 = sld [smem:[#allocation9 + $0x1c]]
        %v896 = vstv %s895
        %v897 = vmul.f32 %v896, %v531
        %v898 = vmul.f32 %v896, %v532
        %901 = vrot.lane.b32.xlu0 %v897, 127
        %v902 = vpop.permute.xlu0 %901
        %903 = vrot.lane.b32.xlu0 %v898, 127
        %v904 = vpop.permute.xlu0 %903
        %v907 = vadd.f32 %v893, %v902
        %v908 = vadd.f32 %v894, %v904
        %s909 = sld [smem:[#allocation9 + $0x1d]]
        %v910 = vstv %s909
        %v911 = vmul.f32 %v910, %v531
        %v912 = vmul.f32 %v910, %v532
        %915 = vrot.lane.b32.xlu0 %v911, 126
        %v916 = vpop.permute.xlu0 %915
        %917 = vrot.lane.b32.xlu0 %v912, 126
        %v918 = vpop.permute.xlu0 %917
        %v921 = vadd.f32 %v907, %v916
        %v922 = vadd.f32 %v908, %v918
        %s923 = sld [smem:[#allocation9 + $0x1e]]
        %v924 = vstv %s923
        %v925 = vmul.f32 %v924, %v533
        %v926 = vmul.f32 %v924, %v534
        %v927 = vadd.f32 %v921, %v925
        %v928 = vadd.f32 %v922, %v926
        %s929 = sld [smem:[#allocation9 + $0x1f]]
        %v930 = vstv %s929
        %v931 = vmul.f32 %v930, %v533
        %v932 = vmul.f32 %v930, %v534
        %935 = vrot.lane.b32.xlu0 %v931, 127
        %v936 = vpop.permute.xlu0 %935
        %937 = vrot.lane.b32.xlu0 %v932, 127
        %v938 = vpop.permute.xlu0 %937
        %v941 = vadd.f32 %v927, %v936
        %v942 = vadd.f32 %v928, %v938
        %s943 = sld [smem:[#allocation9 + $0x20]]
        %v944 = vstv %s943
        %v945 = vmul.f32 %v944, %v533
        %v946 = vmul.f32 %v944, %v534
        %949 = vrot.lane.b32.xlu0 %v945, 126
        %v950 = vpop.permute.xlu0 %949
        %951 = vrot.lane.b32.xlu0 %v946, 126
        %v952 = vpop.permute.xlu0 %951
        %v955 = vadd.f32 %v941, %v950
        %v956 = vadd.f32 %v942, %v952
        %s957 = sld [smem:[#allocation9 + $0x21]]
        %v958 = vstv %s957
        %v959 = vmul.f32 %v958, %v535
        %v960 = vmul.f32 %v958, %v536
        %v961 = vadd.f32 %v955, %v959
        %v962 = vadd.f32 %v956, %v960
        %s963 = sld [smem:[#allocation9 + $0x22]]
        %v964 = vstv %s963
        %v965 = vmul.f32 %v964, %v535
        %v966 = vmul.f32 %v964, %v536
        %969 = vrot.lane.b32.xlu0 %v965, 127
        %v970 = vpop.permute.xlu0 %969
        %971 = vrot.lane.b32.xlu0 %v966, 127
        %v972 = vpop.permute.xlu0 %971
        %v975 = vadd.f32 %v961, %v970
        %v976 = vadd.f32 %v962, %v972
        %s977 = sld [smem:[#allocation9 + $0x23]]
        %v978 = vstv %s977
        %v979 = vmul.f32 %v978, %v535
        %v980 = vmul.f32 %v978, %v536
        %983 = vrot.lane.b32.xlu0 %v979, 126
        %v984 = vpop.permute.xlu0 %983
        %985 = vrot.lane.b32.xlu0 %v980, 126
        %v986 = vpop.permute.xlu0 %985
        %v989 = vadd.f32 %v975, %v984
        %v990 = vadd.f32 %v976, %v986
        %v991 = vmax.f32 %v989, 0.0
        %v992 = vmax.f32 %v990, 0.0
        %995 = vrot.lane.b32.xlu0 %v991, 1
        %v996 = vpop.permute.xlu0 %995
        %997 = vrot.lane.b32.xlu0 %v992, 1
        %v998 = vpop.permute.xlu0 %997
        %s1001 = scalar_lea.vmem [#allocation3], 72
        %1002 = vst.msk [vmem:[%s1001 + $0x1] sm:$0xff] %vm528, %v996
        %1003 = vst.msk [vmem:[%s1001 + $0x9] sm:$0xff] %vm528, %v998
        %s1004 = sld [smem:[#allocation4]]
        %v1005 = vstv %s1004
        %s1006 = sld [smem:[#allocation12]]
        %v1007 = vld [vmem:[#allocation3] sm:$0xff]
        %v1008 = vld [vmem:[#allocation3 + $0x8] sm:$0xff]
        %v1009 = vstv %s1006
        %v1010 = vmul.f32 %v1009, %v1007
        %v1011 = vmul.f32 %v1009, %v1008
        %v1012 = vadd.f32 %v1005, %v1010
        %v1013 = vadd.f32 %v1005, %v1011
        %s1014 = sld [smem:[#allocation12 + $0x1]]
        %v1015 = vstv %s1014
        %v1016 = vmul.f32 %v1015, %v1007
        %v1017 = vmul.f32 %v1015, %v1008
        %1020 = vrot.lane.b32.xlu0 %v1016, 127
        %v1021 = vpop.permute.xlu0 %1020
        %1022 = vrot.lane.b32.xlu0 %v1017, 127
        %v1023 = vpop.permute.xlu0 %1022
        %v1026 = vadd.f32 %v1012, %v1021
        %v1027 = vadd.f32 %v1013, %v1023
        %s1028 = sld [smem:[#allocation12 + $0x2]]
        %v1029 = vstv %s1028
        %v1030 = vmul.f32 %v1029, %v1007
        %v1031 = vmul.f32 %v1029, %v1008
        %1034 = vrot.lane.b32.xlu0 %v1030, 126
        %v1035 = vpop.permute.xlu0 %1034
        %1036 = vrot.lane.b32.xlu0 %v1031, 126
        %v1037 = vpop.permute.xlu0 %1036
        %v1040 = vadd.f32 %v1026, %v1035
        %v1041 = vadd.f32 %v1027, %v1037
        %s1042 = sld [smem:[#allocation12 + $0x3]]
        %v1043 = vld [vmem:[#allocation3 + $0x1] sm:$0xff]
        %v1044 = vld [vmem:[#allocation3 + $0x9] sm:$0xff]
        %v1045 = vstv %s1042
        %v1046 = vmul.f32 %v1045, %v1043
        %v1047 = vmul.f32 %v1045, %v1044
        %v1048 = vadd.f32 %v1040, %v1046
        %v1049 = vadd.f32 %v1041, %v1047
        %s1050 = sld [smem:[#allocation12 + $0x4]]
        %v1051 = vstv %s1050
        %v1052 = vmul.f32 %v1051, %v1043
        %v1053 = vmul.f32 %v1051, %v1044
        %1056 = vrot.lane.b32.xlu0 %v1052, 127
        %v1057 = vpop.permute.xlu0 %1056
        %1058 = vrot.lane.b32.xlu0 %v1053, 127
        %v1059 = vpop.permute.xlu0 %1058
        %v1062 = vadd.f32 %v1048, %v1057
        %v1063 = vadd.f32 %v1049, %v1059
        %s1064 = sld [smem:[#allocation12 + $0x5]]
        %v1065 = vstv %s1064
        %v1066 = vmul.f32 %v1065, %v1043
        %v1067 = vmul.f32 %v1065, %v1044
        %1070 = vrot.lane.b32.xlu0 %v1066, 126
        %v1071 = vpop.permute.xlu0 %1070
        %1072 = vrot.lane.b32.xlu0 %v1067, 126
        %v1073 = vpop.permute.xlu0 %1072
        %v1076 = vadd.f32 %v1062, %v1071
        %v1077 = vadd.f32 %v1063, %v1073
        %s1078 = sld [smem:[#allocation12 + $0x6]]
        %v1079 = vld [vmem:[#allocation3 + $0x2] sm:$0xff]
        %v1080 = vld [vmem:[#allocation3 + $0xa] sm:$0xff]
        %v1081 = vstv %s1078
        %v1082 = vmul.f32 %v1081, %v1079
        %v1083 = vmul.f32 %v1081, %v1080
        %v1084 = vadd.f32 %v1076, %v1082
        %v1085 = vadd.f32 %v1077, %v1083
        %s1086 = sld [smem:[#allocation12 + $0x7]]
        %v1087 = vstv %s1086
        %v1088 = vmul.f32 %v1087, %v1079
        %v1089 = vmul.f32 %v1087, %v1080
        %1092 = vrot.lane.b32.xlu0 %v1088, 127
        %v1093 = vpop.permute.xlu0 %1092
        %1094 = vrot.lane.b32.xlu0 %v1089, 127
        %v1095 = vpop.permute.xlu0 %1094
        %v1098 = vadd.f32 %v1084, %v1093
        %v1099 = vadd.f32 %v1085, %v1095
        %s1100 = sld [smem:[#allocation12 + $0x8]]
        %v1101 = vstv %s1100
        %v1102 = vmul.f32 %v1101, %v1079
        %v1103 = vmul.f32 %v1101, %v1080
        %1106 = vrot.lane.b32.xlu0 %v1102, 126
        %v1107 = vpop.permute.xlu0 %1106
        %1108 = vrot.lane.b32.xlu0 %v1103, 126
        %v1109 = vpop.permute.xlu0 %1108
        %v1112 = vadd.f32 %v1098, %v1107
        %v1113 = vadd.f32 %v1099, %v1109
        %s1114 = sld [smem:[#allocation12 + $0x9]]
        %v1115 = vld [vmem:[%s767] sm:$0xff]
        %v1116 = vld [vmem:[%s767 + $0x8] sm:$0xff]
        %v1117 = vstv %s1114
        %v1118 = vmul.f32 %v1117, %v1115
        %v1119 = vmul.f32 %v1117, %v1116
        %v1120 = vadd.f32 %v1112, %v1118
        %v1121 = vadd.f32 %v1113, %v1119
        %s1122 = sld [smem:[#allocation12 + $0xa]]
        %v1123 = vstv %s1122
        %v1124 = vmul.f32 %v1123, %v1115
        %v1125 = vmul.f32 %v1123, %v1116
        %1128 = vrot.lane.b32.xlu0 %v1124, 127
        %v1129 = vpop.permute.xlu0 %1128
        %1130 = vrot.lane.b32.xlu0 %v1125, 127
        %v1131 = vpop.permute.xlu0 %1130
        %v1134 = vadd.f32 %v1120, %v1129
        %v1135 = vadd.f32 %v1121, %v1131
        %s1136 = sld [smem:[#allocation12 + $0xb]]
        %v1137 = vstv %s1136
        %v1138 = vmul.f32 %v1137, %v1115
        %v1139 = vmul.f32 %v1137, %v1116
        %1142 = vrot.lane.b32.xlu0 %v1138, 126
        %v1143 = vpop.permute.xlu0 %1142
        %1144 = vrot.lane.b32.xlu0 %v1139, 126
        %v1145 = vpop.permute.xlu0 %1144
        %v1148 = vadd.f32 %v1134, %v1143
        %v1149 = vadd.f32 %v1135, %v1145
        %s1150 = sld [smem:[#allocation12 + $0xc]]
        %v1151 = vld [vmem:[%s767 + $0x1] sm:$0xff]
        %v1152 = vld [vmem:[%s767 + $0x9] sm:$0xff]
        %v1153 = vstv %s1150
        %v1154 = vmul.f32 %v1153, %v1151
        %v1155 = vmul.f32 %v1153, %v1152
        %v1156 = vadd.f32 %v1148, %v1154
        %v1157 = vadd.f32 %v1149, %v1155
        %s1158 = sld [smem:[#allocation12 + $0xd]]
        %v1159 = vstv %s1158
        %v1160 = vmul.f32 %v1159, %v1151
        %v1161 = vmul.f32 %v1159, %v1152
        %1164 = vrot.lane.b32.xlu0 %v1160, 127
        %v1165 = vpop.permute.xlu0 %1164
        %1166 = vrot.lane.b32.xlu0 %v1161, 127
        %v1167 = vpop.permute.xlu0 %1166
        %v1170 = vadd.f32 %v1156, %v1165
        %v1171 = vadd.f32 %v1157, %v1167
        %s1172 = sld [smem:[#allocation12 + $0xe]]
        %v1173 = vstv %s1172
        %v1174 = vmul.f32 %v1173, %v1151
        %v1175 = vmul.f32 %v1173, %v1152
        %1178 = vrot.lane.b32.xlu0 %v1174, 126
        %v1179 = vpop.permute.xlu0 %1178
        %1180 = vrot.lane.b32.xlu0 %v1175, 126
        %v1181 = vpop.permute.xlu0 %1180
        %v1184 = vadd.f32 %v1170, %v1179
        %v1185 = vadd.f32 %v1171, %v1181
        %s1186 = sld [smem:[#allocation12 + $0xf]]
        %v1187 = vld [vmem:[%s767 + $0x2] sm:$0xff]
        %v1188 = vld [vmem:[%s767 + $0xa] sm:$0xff]
        %v1189 = vstv %s1186
        %v1190 = vmul.f32 %v1189, %v1187
        %v1191 = vmul.f32 %v1189, %v1188
        %v1192 = vadd.f32 %v1184, %v1190
        %v1193 = vadd.f32 %v1185, %v1191
        %s1194 = sld [smem:[#allocation12 + $0x10]]
        %v1195 = vstv %s1194
        %v1196 = vmul.f32 %v1195, %v1187
        %v1197 = vmul.f32 %v1195, %v1188
        %1200 = vrot.lane.b32.xlu0 %v1196, 127
        %v1201 = vpop.permute.xlu0 %1200
        %1202 = vrot.lane.b32.xlu0 %v1197, 127
        %v1203 = vpop.permute.xlu0 %1202
        %v1206 = vadd.f32 %v1192, %v1201
        %v1207 = vadd.f32 %v1193, %v1203
        %s1208 = sld [smem:[#allocation12 + $0x11]]
        %v1209 = vstv %s1208
        %v1210 = vmul.f32 %v1209, %v1187
        %v1211 = vmul.f32 %v1209, %v1188
        %1214 = vrot.lane.b32.xlu0 %v1210, 126
        %v1215 = vpop.permute.xlu0 %1214
        %1216 = vrot.lane.b32.xlu0 %v1211, 126
        %v1217 = vpop.permute.xlu0 %1216
        %v1220 = vadd.f32 %v1206, %v1215
        %v1221 = vadd.f32 %v1207, %v1217
        %s1222 = sld [smem:[#allocation12 + $0x12]]
        %v1223 = vld [vmem:[%s884] sm:$0xff]
        %v1224 = vld [vmem:[%s884 + $0x8] sm:$0xff]
        %v1225 = vstv %s1222
        %v1226 = vmul.f32 %v1225, %v1223
        %v1227 = vmul.f32 %v1225, %v1224
        %v1228 = vadd.f32 %v1220, %v1226
        %v1229 = vadd.f32 %v1221, %v1227
        %s1230 = sld [smem:[#allocation12 + $0x13]]
        %v1231 = vstv %s1230
        %v1232 = vmul.f32 %v1231, %v1223
        %v1233 = vmul.f32 %v1231, %v1224
        %1236 = vrot.lane.b32.xlu0 %v1232, 127
        %v1237 = vpop.permute.xlu0 %1236
        %1238 = vrot.lane.b32.xlu0 %v1233, 127
        %v1239 = vpop.permute.xlu0 %1238
        %v1242 = vadd.f32 %v1228, %v1237
        %v1243 = vadd.f32 %v1229, %v1239
        %s1244 = sld [smem:[#allocation12 + $0x14]]
        %v1245 = vstv %s1244
        %v1246 = vmul.f32 %v1245, %v1223
        %v1247 = vmul.f32 %v1245, %v1224
        %1250 = vrot.lane.b32.xlu0 %v1246, 126
        %v1251 = vpop.permute.xlu0 %1250
        %1252 = vrot.lane.b32.xlu0 %v1247, 126
        %v1253 = vpop.permute.xlu0 %1252
        %v1256 = vadd.f32 %v1242, %v1251
        %v1257 = vadd.f32 %v1243, %v1253
        %s1258 = sld [smem:[#allocation12 + $0x15]]
        %v1259 = vld [vmem:[%s884 + $0x1] sm:$0xff]
        %v1260 = vld [vmem:[%s884 + $0x9] sm:$0xff]
        %v1261 = vstv %s1258
        %v1262 = vmul.f32 %v1261, %v1259
        %v1263 = vmul.f32 %v1261, %v1260
        %v1264 = vadd.f32 %v1256, %v1262
        %v1265 = vadd.f32 %v1257, %v1263
        %s1266 = sld [smem:[#allocation12 + $0x16]]
        %v1267 = vstv %s1266
        %v1268 = vmul.f32 %v1267, %v1259
        %v1269 = vmul.f32 %v1267, %v1260
        %1272 = vrot.lane.b32.xlu0 %v1268, 127
        %v1273 = vpop.permute.xlu0 %1272
        %1274 = vrot.lane.b32.xlu0 %v1269, 127
        %v1275 = vpop.permute.xlu0 %1274
        %v1278 = vadd.f32 %v1264, %v1273
        %v1279 = vadd.f32 %v1265, %v1275
        %s1280 = sld [smem:[#allocation12 + $0x17]]
        %v1281 = vstv %s1280
        %v1282 = vmul.f32 %v1281, %v1259
        %v1283 = vmul.f32 %v1281, %v1260
        %1286 = vrot.lane.b32.xlu0 %v1282, 126
        %v1287 = vpop.permute.xlu0 %1286
        %1288 = vrot.lane.b32.xlu0 %v1283, 126
        %v1289 = vpop.permute.xlu0 %1288
        %v1292 = vadd.f32 %v1278, %v1287
        %v1293 = vadd.f32 %v1279, %v1289
        %s1294 = sld [smem:[#allocation12 + $0x18]]
        %v1295 = vld [vmem:[%s884 + $0x2] sm:$0xff]
        %v1296 = vld [vmem:[%s884 + $0xa] sm:$0xff]
        %v1297 = vstv %s1294
        %v1298 = vmul.f32 %v1297, %v1295
        %v1299 = vmul.f32 %v1297, %v1296
        %v1300 = vadd.f32 %v1292, %v1298
        %v1301 = vadd.f32 %v1293, %v1299
        %s1302 = sld [smem:[#allocation12 + $0x19]]
        %v1303 = vstv %s1302
        %v1304 = vmul.f32 %v1303, %v1295
        %v1305 = vmul.f32 %v1303, %v1296
        %1308 = vrot.lane.b32.xlu0 %v1304, 127
        %v1309 = vpop.permute.xlu0 %1308
        %1310 = vrot.lane.b32.xlu0 %v1305, 127
        %v1311 = vpop.permute.xlu0 %1310
        %v1314 = vadd.f32 %v1300, %v1309
        %v1315 = vadd.f32 %v1301, %v1311
        %s1316 = sld [smem:[#allocation12 + $0x1a]]
        %v1317 = vstv %s1316
        %v1318 = vmul.f32 %v1317, %v1295
        %v1319 = vmul.f32 %v1317, %v1296
        %1322 = vrot.lane.b32.xlu0 %v1318, 126
        %v1323 = vpop.permute.xlu0 %1322
        %1324 = vrot.lane.b32.xlu0 %v1319, 126
        %v1325 = vpop.permute.xlu0 %1324
        %v1328 = vadd.f32 %v1314, %v1323
        %v1329 = vadd.f32 %v1315, %v1325
        %s1330 = sld [smem:[#allocation12 + $0x1b]]
        %v1331 = vld [vmem:[%s1001] sm:$0xff]
        %v1332 = vld [vmem:[%s1001 + $0x8] sm:$0xff]
        %v1333 = vstv %s1330
        %v1334 = vmul.f32 %v1333, %v1331
        %v1335 = vmul.f32 %v1333, %v1332
        %v1336 = vadd.f32 %v1328, %v1334
        %v1337 = vadd.f32 %v1329, %v1335
        %s1338 = sld [smem:[#allocation12 + $0x1c]]
        %v1339 = vstv %s1338
        %v1340 = vmul.f32 %v1339, %v1331
        %v1341 = vmul.f32 %v1339, %v1332
        %1344 = vrot.lane.b32.xlu0 %v1340, 127
        %v1345 = vpop.permute.xlu0 %1344
        %1346 = vrot.lane.b32.xlu0 %v1341, 127
        %v1347 = vpop.permute.xlu0 %1346
        %v1350 = vadd.f32 %v1336, %v1345
        %v1351 = vadd.f32 %v1337, %v1347
        %s1352 = sld [smem:[#allocation12 + $0x1d]]
        %v1353 = vstv %s1352
        %v1354 = vmul.f32 %v1353, %v1331
        %v1355 = vmul.f32 %v1353, %v1332
        %1358 = vrot.lane.b32.xlu0 %v1354, 126
        %v1359 = vpop.permute.xlu0 %1358
        %1360 = vrot.lane.b32.xlu0 %v1355, 126
        %v1361 = vpop.permute.xlu0 %1360
        %v1364 = vadd.f32 %v1350, %v1359
        %v1365 = vadd.f32 %v1351, %v1361
        %s1366 = sld [smem:[#allocation12 + $0x1e]]
        %v1367 = vld [vmem:[%s1001 + $0x1] sm:$0xff]
        %v1368 = vld [vmem:[%s1001 + $0x9] sm:$0xff]
        %v1369 = vstv %s1366
        %v1370 = vmul.f32 %v1369, %v1367
        %v1371 = vmul.f32 %v1369, %v1368
        %v1372 = vadd.f32 %v1364, %v1370
        %v1373 = vadd.f32 %v1365, %v1371
        %s1374 = sld [smem:[#allocation12 + $0x1f]]
        %v1375 = vstv %s1374
        %v1376 = vmul.f32 %v1375, %v1367
        %v1377 = vmul.f32 %v1375, %v1368
        %1380 = vrot.lane.b32.xlu0 %v1376, 127
        %v1381 = vpop.permute.xlu0 %1380
        %1382 = vrot.lane.b32.xlu0 %v1377, 127
        %v1383 = vpop.permute.xlu0 %1382
        %v1386 = vadd.f32 %v1372, %v1381
        %v1387 = vadd.f32 %v1373, %v1383
        %s1388 = sld [smem:[#allocation12 + $0x20]]
        %v1389 = vstv %s1388
        %v1390 = vmul.f32 %v1389, %v1367
        %v1391 = vmul.f32 %v1389, %v1368
        %1394 = vrot.lane.b32.xlu0 %v1390, 126
        %v1395 = vpop.permute.xlu0 %1394
        %1396 = vrot.lane.b32.xlu0 %v1391, 126
        %v1397 = vpop.permute.xlu0 %1396
        %v1400 = vadd.f32 %v1386, %v1395
        %v1401 = vadd.f32 %v1387, %v1397
        %s1402 = sld [smem:[#allocation12 + $0x21]]
        %v1403 = vld [vmem:[%s1001 + $0x2] sm:$0xff]
        %v1404 = vld [vmem:[%s1001 + $0xa] sm:$0xff]
        %v1405 = vstv %s1402
        %v1406 = vmul.f32 %v1405, %v1403
        %v1407 = vmul.f32 %v1405, %v1404
        %v1408 = vadd.f32 %v1400, %v1406
        %v1409 = vadd.f32 %v1401, %v1407
        %s1410 = sld [smem:[#allocation12 + $0x22]]
        %v1411 = vstv %s1410
        %v1412 = vmul.f32 %v1411, %v1403
        %v1413 = vmul.f32 %v1411, %v1404
        %1416 = vrot.lane.b32.xlu0 %v1412, 127
        %v1417 = vpop.permute.xlu0 %1416
        %1418 = vrot.lane.b32.xlu0 %v1413, 127
        %v1419 = vpop.permute.xlu0 %1418
        %v1422 = vadd.f32 %v1408, %v1417
        %v1423 = vadd.f32 %v1409, %v1419
        %s1424 = sld [smem:[#allocation12 + $0x23]]
        %v1425 = vstv %s1424
        %v1426 = vmul.f32 %v1425, %v1403
        %v1427 = vmul.f32 %v1425, %v1404
        %1430 = vrot.lane.b32.xlu0 %v1426, 126
        %v1431 = vpop.permute.xlu0 %1430
        %1432 = vrot.lane.b32.xlu0 %v1427, 126
        %v1433 = vpop.permute.xlu0 %1432
        %v1436 = vadd.f32 %v1422, %v1431
        %v1437 = vadd.f32 %v1423, %v1433
        %s1438 = sld [smem:[#allocation14]]
        %v1439 = vstv %s1438
        %v1440 = vmul.f32 %v1439, %v1436
        %v1441 = vmul.f32 %v1439, %v1437
        %s1442 = sld [smem:[#allocation14 + $0x1]]
        %s1443 = sld [smem:[#allocation5 + %s38]]
        %v1444 = vld [vmem:[%s448] sm:$0xff]
        %v1445 = vld [vmem:[%s448 + $0x8] sm:$0xff]
        %v1446 = vstv %s1443
        %v1447 = vmul.f32 %v1446, %v1444
        %v1448 = vmul.f32 %v1446, %v1445
        %v1449 = vadd.f32 %v1440, %v1447
        %v1450 = vadd.f32 %v1441, %v1448
        %v1451 = vstv %s1442
        %v1452 = vmul.f32 %v1451, %v1449
        %v1453 = vmul.f32 %v1451, %v1450
        %vm1454 = vcmask 130048
        %1455 = vst.msk [vmem:[%s486] sm:$0xff] %vm1454, %v1436
        %1456 = vst.msk [vmem:[%s486 + $0x8] sm:$0xff] %vm1454, %v1437
        %1457 = vst.msk [vmem:[%s493] sm:$0xff] %vm1454, %v1440
        %1458 = vst.msk [vmem:[%s493 + $0x8] sm:$0xff] %vm1454, %v1441
        %1459 = vst.msk [vmem:[%s500] sm:$0xff] %vm1454, %v1452
        %1460 = vst.msk [vmem:[%s500 + $0x8] sm:$0xff] %vm1454, %v1453
        %s1461 = sand.u32 %s224, 1
        %s1462 = scalar_lea.sflag [#allocation7], %s1461
        %s1463 = sand.u32 %s224, 1
        %s1464 = smul.addr %s1463, 16
        %s1465 = scalar_lea.vmem [#allocation18], %s1464
        %s1466 = sand.u32 %s38, 1
        %s1467 = scalar_lea.sflag [#allocation20], %s1466
        %s1468 = sand.u32 %s250, 1
        %s1469 = smul.addr %s1468, 16
        %s1470 = scalar_lea.vmem [#allocation19], %s1469
        %s1471 = sand.u32 %s38, 1
        %s1472 = scalar_lea.sflag [#allocation20], %s1471
        %s1473 = sand.u32 %s276, 1
        %s1474 = smul.addr %s1473, 16
        %s1475 = scalar_lea.vmem [#allocation21], %s1474
        // Predicated region
        $region81: #{tpu_custom_call.1} parent=51 // pred_check
          %p1476 = pneg %p234
        $region82: #{tpu_custom_call.1} parent=51 // pred_check_branch
          %1478 = sbr.rel (%p1476) target = $region84
        $region83: #{tpu_custom_call.1} parent=51 // pred_region
          %s1480 = ssub.s32 256, 256
          %1481 = vsyncadd %s1462, %s1480
          %s1482 = smul.addr %s38, 2
          %s1483 = smul.addr %s1482, 128
          %s1484 = scalar_lea.hbm %s8, %s1483
          %s1485 = sshll.u32 %s1465, 4
          %s1486 = int_to_ptr.vmem [resolvable:$true] %s1485
          %1491 = dma.vmem_to_hbm [thread:$0]  %s1486, 256, %s1484, %s1462, 128, 128, 8
        $region84: #{tpu_custom_call.1} parent=51 // pred_fallthru
          _
        // Predicated region
        $region85: #{tpu_custom_call.1} parent=51 // pred_check
          %p1492 = pneg %p260
        $region86: #{tpu_custom_call.1} parent=51 // pred_check_branch
          %1494 = sbr.rel (%p1492) target = $region88
        $region87: #{tpu_custom_call.1} parent=51 // pred_region
          %s1496 = ssub.s32 256, 256
          %1497 = vsyncadd %s1467, %s1496
          %s1498 = smul.addr %s38, 2
          %s1499 = smul.addr %s1498, 128
          %s1500 = scalar_lea.hbm %s9, %s1499
          %s1501 = sshll.u32 %s1470, 4
          %s1502 = int_to_ptr.vmem [resolvable:$true] %s1501
          %1507 = dma.vmem_to_hbm [thread:$0]  %s1502, 256, %s1500, %s1467, 128, 128, 8
        $region88: #{tpu_custom_call.1} parent=51 // pred_fallthru
          _
        // Predicated region
        $region89: #{tpu_custom_call.1} parent=51 // pred_check
          %p1508 = pneg %p286
        $region90: #{tpu_custom_call.1} parent=51 // pred_check_branch
          %1510 = sbr.rel (%p1508) target = $region92
        $region91: #{tpu_custom_call.1} parent=51 // pred_region
          %s1512 = ssub.s32 256, 256
          %1513 = vsyncadd %s1472, %s1512
          %s1514 = smul.addr %s38, 2
          %s1515 = smul.addr %s1514, 128
          %s1516 = scalar_lea.hbm %s10, %s1515
          %s1517 = sshll.u32 %s1475, 4
          %s1518 = int_to_ptr.vmem [resolvable:$true] %s1517
          %1523 = dma.vmem_to_hbm [thread:$0]  %s1518, 256, %s1516, %s1472, 128, 128, 8
        $region92: #{tpu_custom_call.1} parent=51 // pred_fallthru
          _
      $region52: #{tpu_custom_call.1} parent=5 // pred_fallthru
        _
      %p1524 = scmp.le.s32.totalorder 2, %s33
      // Predicated region
      $region93: #{tpu_custom_call.1} parent=5 // pred_check
        %p1525 = pneg %p1524
      $region94: #{tpu_custom_call.1} parent=5 // pred_check_branch
        %1527 = sbr.rel (%p1525) target = $region96
      $region95: #{tpu_custom_call.1} parent=5 // pred_region
        %s1528 = ssub.s32 %s33, 2
        // Predicated region
        $region97: #{tpu_custom_call.1} parent=95 // pred_check
          %p1529 = pneg %p240
        $region98: #{tpu_custom_call.1} parent=95 // pred_check_branch
          %1531 = sbr.rel (%p1529) target = $region100
        $region99: #{tpu_custom_call.1} parent=95 // pred_region
          %s1532 = sand.u32 %s225, 1
          %s1533 = scalar_lea.sflag [#allocation7], %s1532
          %s1534 = sand.u32 %s225, 1
          %s1535 = smul.addr %s1534, 16
          %s1536 = scalar_lea.vmem [#allocation18], %s1535
          %1537 = dma.done %s1533, 256
        $region100: #{tpu_custom_call.1} parent=95 // pred_fallthru
          _
        // Predicated region
        $region101: #{tpu_custom_call.1} parent=95 // pred_check
          %p1538 = pneg %p266
        $region102: #{tpu_custom_call.1} parent=95 // pred_check_branch
          %1540 = sbr.rel (%p1538) target = $region104
        $region103: #{tpu_custom_call.1} parent=95 // pred_region
          %s1541 = sand.u32 %s39, 1
          %s1542 = scalar_lea.sflag [#allocation20], %s1541
          %s1543 = sand.u32 %s251, 1
          %s1544 = smul.addr %s1543, 16
          %s1545 = scalar_lea.vmem [#allocation19], %s1544
          %1546 = dma.done %s1542, 256
        $region104: #{tpu_custom_call.1} parent=95 // pred_fallthru
          _
        // Predicated region
        $region105: #{tpu_custom_call.1} parent=95 // pred_check
          %p1547 = pneg %p292
        $region106: #{tpu_custom_call.1} parent=95 // pred_check_branch
          %1549 = sbr.rel (%p1547) target = $region108
        $region107: #{tpu_custom_call.1} parent=95 // pred_region
          %s1550 = sand.u32 %s39, 1
          %s1551 = scalar_lea.sflag [#allocation20], %s1550
          %s1552 = sand.u32 %s277, 1
          %s1553 = smul.addr %s1552, 16
          %s1554 = scalar_lea.vmem [#allocation21], %s1553
          %1555 = dma.done %s1551, 256
        $region108: #{tpu_custom_call.1} parent=95 // pred_fallthru
          _
      $region96: #{tpu_custom_call.1} parent=5 // pred_fallthru
        _
    $region6: #{tpu_custom_call.1} parent=1 // loop_footer
      %s37 = sadd.s32 1, %s33
    $region7: #{tpu_custom_call.1} parent=1 // loop_footer_branch
      %32 = sbr.rel target = $region3
    $region8: #{tpu_custom_call.1} parent=1 // loop_exit
      _
    %1556 = vsyncpa [#allocation6], 1
    %s1557 = scalar_lea.sflag [#allocation6], 1
    %1558 = vsyncpa %s1557, 1
    %1559 = vsyncpa [#allocation17], 1
    %s1560 = scalar_lea.sflag [#allocation17], 1
    %1561 = vsyncpa %s1560, 1
    %1562 = vsyncpa [#allocation7], 1
    %s1563 = scalar_lea.sflag [#allocation7], 1
    %1564 = vsyncpa %s1563, 1
    %1565 = vsyncpa [#allocation20], 1
    %s1566 = scalar_lea.sflag [#allocation20], 1
    %1567 = vsyncpa %s1566, 1
    %1568 = vsyncpa [#allocation8], 1
    %s1569 = scalar_lea.sflag [#allocation8], 1
    %1570 = vsyncpa %s1569, 1
    %1571 = vsyncpa [#allocation10], 1
    %1572 = vsyncpa [#allocation13], 1

</llo_original>
